<compile_context>
chip_gen: v6e
topology: v6e:2x2x1
jax: 0.10.0
libtpu: 0.0.40
codegen_flags: <defaults>
</compile_context>

<pallas_src>
import functools

import jax
import jax.numpy as jnp
from jax.experimental import pallas as pl
from jax.experimental.pallas import tpu as pltpu

NORM_EPS = 1e-5


def _layernorm(x, eps=NORM_EPS):
    # nn.LayerNorm(elementwise_affine=False): biased variance, eps inside rsqrt.
    mu = jnp.mean(x, axis=-1, keepdims=True)
    var = jnp.mean((x - mu) ** 2, axis=-1, keepdims=True)
    return (x - mu) * jax.lax.rsqrt(var + eps)


def _gelu_tanh(x):
    # torch.nn.GELU(approximate='tanh')
    c = 0.7978845608028654  # sqrt(2/pi)
    return 0.5 * x * (1.0 + jnp.tanh(c * (x + 0.044715 * x * x * x)))


def _pad_rows(a, n_rows):
    """Pad a (R, D) array with zero rows up to n_rows (static)."""
    r = a.shape[0]
    if r == n_rows:
        return a
    return jnp.concatenate([a, jnp.zeros((n_rows - r, a.shape[1]), a.dtype)], axis=0)


def fused_backbone_kernel(h_ref, enc_ref,
                          wq_ref, bq_ref, wkv_ref, bkv_ref,
                          wo_ref, bo_ref, w1_ref, b1_ref, w2_ref, b2_ref,
                          out_ref, h_res,
                          *, num_heads, head_dim):
    layer = pl.program_id(1)
    num_layers = pl.num_programs(1)

    _, T, D = h_ref.shape
    S = enc_ref.shape[1]
    S_kv = max(T, S)

    # ---- load / initialize the VMEM-resident residual stream ---------------
    @pl.when(layer == 0)
    def _():
        h_res[...] = h_ref[0]

    h = h_res[...]                                   # (T, D) f32

    # ---- norm1 + attention --------------------------------------------------
    x = _layernorm(h)                                # (T, D) f32
    x_bf = x.astype(jnp.bfloat16)

    # Odd layers: self-attention over the normed hidden states.
    # Even layers: cross-attention over the raw encoder states.
    is_self = (layer % 2) == 1
    enc = enc_ref[0]                                 # (S, D) f32
    kv_in = jnp.where(is_self, _pad_rows(x, S_kv), _pad_rows(enc, S_kv))  # (S_kv, D)
    kv_len = jnp.where(is_self, T, S)                # number of valid KV rows

    # Fused K|V projection: one (S_kv, D) x (D, 2D) matmul, lane-aligned slices.
    q = jnp.dot(x_bf, wq_ref[0], preferred_element_type=jnp.float32) + bq_ref[0]
    kv = jnp.dot(kv_in.astype(jnp.bfloat16), wkv_ref[0],
                 preferred_element_type=jnp.float32) + bkv_ref[0]
    k = kv[:, :D]
    v = kv[:, D:]

    scale = 1.0 / (head_dim ** 0.5)
    col = jax.lax.broadcasted_iota(jnp.int32, (T, S_kv), 1)
    valid = col < kv_len                             # mask padded KV rows

    wo = wo_ref[0]                                   # (D, D) bf16
    attn = jnp.zeros((T, D), jnp.float32) + bo_ref[0]
    for hh in range(num_heads):                      # static loop over heads
        lo = hh * head_dim
        qh = q[:, lo:lo + head_dim]
        kh = k[:, lo:lo + head_dim]
        vh = v[:, lo:lo + head_dim]
        s = jnp.dot(qh, kh.T, preferred_element_type=jnp.float32) * scale
        s = jnp.where(valid, s, -jnp.inf)
        s = s - jnp.max(s, axis=-1, keepdims=True)
        p = jnp.exp(s)
        p = p * pl.reciprocal(jnp.sum(p, axis=-1, keepdims=True), approx=True)
        oh = jnp.dot(p, vh, preferred_element_type=jnp.float32)       # (T, hd)
        # Accumulate directly into the output projection (no concatenate).
        attn = attn + jnp.dot(oh.astype(jnp.bfloat16), wo[lo:lo + head_dim, :],
                              preferred_element_type=jnp.float32)
    h = h + attn                                     # residual 1

    # ---- norm3 + FFN ---------------------------------------------------------
    y = _layernorm(h)
    y = jnp.dot(y.astype(jnp.bfloat16), w1_ref[0],
                preferred_element_type=jnp.float32) + b1_ref[0]
    y = _gelu_tanh(y)                                # f32 elementwise (v5e-safe)
    y = jnp.dot(y.astype(jnp.bfloat16), w2_ref[0],
                preferred_element_type=jnp.float32) + b2_ref[0]
    h = h + y                                        # residual 2

    h_res[...] = h                                   # carry to next layer step

    # Final LayerNorm fused into the last layer's epilogue.
    @pl.when(layer == num_layers - 1)
    def _():
        out_ref[0] = _layernorm(h)


def l1_action_backbone_forward(hidden_states, encoder_hidden_states, params,
                               *, num_heads, head_dim):
    B, T, D = hidden_states.shape
    S = encoder_hidden_states.shape[1]
    L = params["wq"].shape[0]
    H = 4 * D  # FFN hidden width

    def wspec(shape):
        return pl.BlockSpec((1,) + shape, lambda b, l: (l, 0, 0))

    kern = functools.partial(fused_backbone_kernel,
                             num_heads=num_heads, head_dim=head_dim)

    return pl.pallas_call(
        kern,
        out_shape=jax.ShapeDtypeStruct((B, T, D), jnp.float32),
        grid=(B, L),
        in_specs=[
            pl.BlockSpec((1, T, D), lambda b, l: (b, 0, 0)),   # hidden_states
            pl.BlockSpec((1, S, D), lambda b, l: (b, 0, 0)),   # encoder_hidden_states
            wspec((D, D)), wspec((1, D)),                      # Wq,  bq
            wspec((D, 2 * D)), wspec((1, 2 * D)),              # Wkv, bkv
            wspec((D, D)), wspec((1, D)),                      # Wo,  bo
            wspec((D, H)), wspec((1, H)),                      # W1,  b1
            wspec((H, D)), wspec((1, D)),                      # W2,  b2
        ],
        out_specs=pl.BlockSpec((1, T, D), lambda b, l: (b, 0, 0)),
        scratch_shapes=[pltpu.VMEM((T, D), jnp.float32)],      # residual stream h
        compiler_params=pltpu.CompilerParams(
            dimension_semantics=("parallel", "arbitrary"),
            vmem_limit_bytes=32 * 1024 * 1024,
        ),
    )(hidden_states, encoder_hidden_states,
      params["wq"], params["bq"], params["wkv"], params["bkv"],
      params["wo"], params["bo"], params["w1"], params["b1"],
      params["w2"], params["b2"])


def init_params(key, num_layers, dim, ffn_mult=4, scale=0.02,
                weight_dtype=jnp.bfloat16):
    """Deterministic synthetic weights (module shapes; not a checkpoint).

    Weights are stacked along a leading layer axis and stored in bf16; K and V
    projections are fused into a single (D, 2D) matrix. Biases stay f32.
    """
    wq_l, wkv_l, wo_l, w1_l, w2_l = [], [], [], [], []
    for layer in range(num_layers):
        k = jax.random.fold_in(key, layer)
        ks = jax.random.split(k, 6)
        wq = jax.random.normal(ks[0], (dim, dim), jnp.float32) * scale
        wk = jax.random.normal(ks[1], (dim, dim), jnp.float32) * scale
        wv = jax.random.normal(ks[2], (dim, dim), jnp.float32) * scale
        wo = jax.random.normal(ks[3], (dim, dim), jnp.float32) * scale
        w1 = jax.random.normal(ks[4], (dim, ffn_mult * dim), jnp.float32) * scale
        w2 = jax.random.normal(ks[5], (ffn_mult * dim, dim), jnp.float32) * scale
        wq_l.append(wq)
        wkv_l.append(jnp.concatenate([wk, wv], axis=1))
        wo_l.append(wo)
        w1_l.append(w1)
        w2_l.append(w2)

    def stack(xs):
        return jnp.stack(xs, axis=0).astype(weight_dtype)

    return dict(
        wq=stack(wq_l), wkv=stack(wkv_l), wo=stack(wo_l),
        w1=stack(w1_l), w2=stack(w2_l),
        bq=jnp.zeros((num_layers, 1, dim), jnp.float32),
        bkv=jnp.zeros((num_layers, 1, 2 * dim), jnp.float32),
        bo=jnp.zeros((num_layers, 1, dim), jnp.float32),
        b1=jnp.zeros((num_layers, 1, ffn_mult * dim), jnp.float32),
        b2=jnp.zeros((num_layers, 1, dim), jnp.float32),
    )


if __name__ == "__main__":
    # Small-config instance of the module: inner_dim = num_heads * head_dim.
    NUM_HEADS = 2
    HEAD_DIM = 64
    INNER_DIM = NUM_HEADS * HEAD_DIM   # 128
    NUM_LAYERS = 4
    B, T, S = 2, 8, 16                 # batch, action tokens, encoder tokens

    key = jax.random.PRNGKey(0)
    k_h, k_e, k_p = jax.random.split(key, 3)
    hidden_states = jax.random.normal(k_h, (B, T, INNER_DIM), jnp.float32)
    encoder_hidden_states = jax.random.normal(k_e, (B, S, INNER_DIM), jnp.float32)
    params = init_params(k_p, NUM_LAYERS, INNER_DIM)

    out = l1_action_backbone_forward(hidden_states, encoder_hidden_states, params,
                                     num_heads=NUM_HEADS, head_dim=HEAD_DIM)
    out = jax.block_until_ready(out)
    assert out.shape == (B, T, INNER_DIM)
    assert bool(jnp.isfinite(out).all())
    print("KERNEL_OK")
</pallas_src>

<mosaic_0001>
module attributes {stable_mosaic.version = 11 : i64} {
  func.func @fused_backbone_kernel(%arg0: i32, %arg1: i32, %arg2: memref<1x8x128xf32, #tpu.memory_space<vmem>>, %arg3: memref<1x16x128xf32, #tpu.memory_space<vmem>>, %arg4: memref<1x128x128xbf16, #tpu.memory_space<vmem>>, %arg5: memref<1x1x128xf32, #tpu.memory_space<vmem>>, %arg6: memref<1x128x256xbf16, #tpu.memory_space<vmem>>, %arg7: memref<1x1x256xf32, #tpu.memory_space<vmem>>, %arg8: memref<1x128x128xbf16, #tpu.memory_space<vmem>>, %arg9: memref<1x1x128xf32, #tpu.memory_space<vmem>>, %arg10: memref<1x128x512xbf16, #tpu.memory_space<vmem>>, %arg11: memref<1x1x512xf32, #tpu.memory_space<vmem>>, %arg12: memref<1x512x128xbf16, #tpu.memory_space<vmem>>, %arg13: memref<1x1x128xf32, #tpu.memory_space<vmem>>, %arg14: memref<1x8x128xf32, #tpu.memory_space<vmem>>, %arg15: memref<8x128xf32, #tpu.memory_space<vmem>>) attributes {dimension_semantics = [#tpu.dimension_semantics<parallel>, #tpu.dimension_semantics<arbitrary>], iteration_bounds = array<i64: 2, 4>, scalar_prefetch = 0 : i64, scratch_operands = 1 : i64, tpu.core_type = #tpu.core_type<tc>, window_params = [{transform_indices = @transform_0, window_bounds = array<i64: 1, 8, 128>}, {transform_indices = @transform_1, window_bounds = array<i64: 1, 16, 128>}, {transform_indices = @transform_2, window_bounds = array<i64: 1, 128, 128>}, {transform_indices = @transform_3, window_bounds = array<i64: 1, 1, 128>}, {transform_indices = @transform_4, window_bounds = array<i64: 1, 128, 256>}, {transform_indices = @transform_5, window_bounds = array<i64: 1, 1, 256>}, {transform_indices = @transform_6, window_bounds = array<i64: 1, 128, 128>}, {transform_indices = @transform_7, window_bounds = array<i64: 1, 1, 128>}, {transform_indices = @transform_8, window_bounds = array<i64: 1, 128, 512>}, {transform_indices = @transform_9, window_bounds = array<i64: 1, 1, 512>}, {transform_indices = @transform_10, window_bounds = array<i64: 1, 512, 128>}, {transform_indices = @transform_11, window_bounds = array<i64: 1, 1, 128>}, {transform_indices = @transform_12, window_bounds = array<i64: 1, 8, 128>}]} {
    %c0_i32 = arith.constant 0 : i32
    %0 = arith.cmpi eq, %arg1, %c0_i32 : i32
    %1 = arith.extui %0 : i1 to i32
    %c0_i32_0 = arith.constant 0 : i32
    %2 = arith.cmpi ne, %1, %c0_i32_0 : i32
    scf.if %2 {
      %c0_76 = arith.constant 0 : index
      %c0_77 = arith.constant 0 : index
      %c0_78 = arith.constant 0 : index
      %168 = vector.load %arg2[%c0_76, %c0_77, %c0_78] : memref<1x8x128xf32, #tpu.memory_space<vmem>>, vector<1x8x128xf32>
      %169 = vector.shape_cast %168 : vector<1x8x128xf32> to vector<8x128xf32>
      %c0_79 = arith.constant 0 : index
      %c0_80 = arith.constant 0 : index
      %170 = vector.load %arg15[%c0_79, %c0_80] : memref<8x128xf32, #tpu.memory_space<vmem>>, vector<8x128xf32>
      tpu.vector_store %arg15[%c0_79, %c0_80], %169 {strides = array<i32>} : memref<8x128xf32, #tpu.memory_space<vmem>>, vector<8x128xf32>,
    } else {
    }
    %c0 = arith.constant 0 : index
    %c0_1 = arith.constant 0 : index
    %3 = vector.load %arg15[%c0, %c0_1] : memref<8x128xf32, #tpu.memory_space<vmem>>, vector<8x128xf32>
    %cst = arith.constant dense<0.000000e+00> : vector<8xf32>
    %4 = vector.multi_reduction <add>, %3, %cst [1] : vector<8x128xf32> to vector<8xf32>
    %5 = vector.shape_cast %4 : vector<8xf32> to vector<8x1xf32>
    %cst_2 = arith.constant 1.280000e+02 : f32
    %6 = vector.broadcast %cst_2 : f32 to vector<8x1xf32>
    %7 = arith.divf %5, %6 : vector<8x1xf32>
    %8 = vector.broadcast %7 : vector<8x1xf32> to vector<8x128xf32>
    %9 = arith.subf %3, %8 : vector<8x128xf32>
    %10 = arith.mulf %9, %9 : vector<8x128xf32>
    %cst_3 = arith.constant dense<0.000000e+00> : vector<8xf32>
    %11 = vector.multi_reduction <add>, %10, %cst_3 [1] : vector<8x128xf32> to vector<8xf32>
    %12 = vector.shape_cast %11 : vector<8xf32> to vector<8x1xf32>
    %cst_4 = arith.constant 1.280000e+02 : f32
    %13 = vector.broadcast %cst_4 : f32 to vector<8x1xf32>
    %14 = arith.divf %12, %13 : vector<8x1xf32>
    %15 = vector.broadcast %7 : vector<8x1xf32> to vector<8x128xf32>
    %16 = arith.subf %3, %15 : vector<8x128xf32>
    %cst_5 = arith.constant 9.99999974E-6 : f32
    %17 = vector.broadcast %cst_5 : f32 to vector<8x1xf32>
    %18 = arith.addf %14, %17 : vector<8x1xf32>
    %19 = math.rsqrt %18 : vector<8x1xf32>
    %20 = vector.broadcast %19 : vector<8x1xf32> to vector<8x128xf32>
    %21 = arith.mulf %16, %20 : vector<8x128xf32>
    %22 = arith.truncf %21 : vector<8x128xf32> to vector<8x128xbf16>
    %c2_i32 = arith.constant 2 : i32
    %c0_i32_6 = arith.constant 0 : i32
    %23 = arith.cmpi eq, %c2_i32, %c0_i32_6 : i32
    %c1_i32 = arith.constant 1 : i32
    %24 = arith.select %23, %c1_i32, %c2_i32 : i32
    %25 = arith.remsi %arg1, %24 : i32
    %c0_i32_7 = arith.constant 0 : i32
    %26 = arith.cmpi ne, %25, %c0_i32_7 : i32
    %c0_i32_8 = arith.constant 0 : i32
    %27 = arith.cmpi slt, %25, %c0_i32_8 : i32
    %c0_i32_9 = arith.constant 0 : i32
    %28 = arith.cmpi slt, %24, %c0_i32_9 : i32
    %29 = arith.xori %27, %28 : i1
    %30 = arith.andi %29, %26 : i1
    %31 = arith.addi %25, %24 : i32
    %32 = arith.select %30, %31, %25 : i32
    %c1_i32_10 = arith.constant 1 : i32
    %33 = arith.cmpi eq, %32, %c1_i32_10 : i32
    %c0_11 = arith.constant 0 : index
    %c0_12 = arith.constant 0 : index
    %c0_13 = arith.constant 0 : index
    %34 = vector.load %arg3[%c0_11, %c0_12, %c0_13] : memref<1x16x128xf32, #tpu.memory_space<vmem>>, vector<1x16x128xf32>
    %35 = vector.shape_cast %34 : vector<1x16x128xf32> to vector<16x128xf32>
    %cst_14 = arith.constant 0.000000e+00 : f32
    %36 = vector.broadcast %cst_14 : f32 to vector<8x128xf32>
    %37 = tpu.concatenate %21, %36 in 0 : vector<8x128xf32>, vector<8x128xf32> -> vector<16x128xf32>
    %38 = arith.select %33, %37, %35 : vector<16x128xf32>
    %c8_i32 = arith.constant 8 : i32
    %c16_i32 = arith.constant 16 : i32
    %39 = arith.select %33, %c8_i32, %c16_i32 : i32
    %c0_15 = arith.constant 0 : index
    %c0_16 = arith.constant 0 : index
    %c0_17 = arith.constant 0 : index
    %40 = vector.load %arg4[%c0_15, %c0_16, %c0_17] : memref<1x128x128xbf16, #tpu.memory_space<vmem>>, vector<1x128x128xbf16>
    %41 = vector.shape_cast %40 : vector<1x128x128xbf16> to vector<128x128xbf16>
    %cst_18 = arith.constant dense<0.000000e+00> : vector<8x128xf32>
    %42 = tpu.matmul %22, %41, %cst_18 {dimension_numbers = #tpu.dot_dimension_numbers<[1], [0], [0], [1], [0, 0, 1, 1], [], []>} : vector<8x128xbf16>, vector<128x128xbf16>, vector<8x128xf32> -> vector<8x128xf32>
    %c0_19 = arith.constant 0 : index
    %c0_20 = arith.constant 0 : index
    %c0_21 = arith.constant 0 : index
    %43 = vector.load %arg5[%c0_19, %c0_20, %c0_21] : memref<1x1x128xf32, #tpu.memory_space<vmem>>, vector<1x1x128xf32>
    %44 = vector.shape_cast %43 : vector<1x1x128xf32> to vector<1x128xf32>
    %45 = vector.broadcast %44 : vector<1x128xf32> to vector<8x128xf32>
    %46 = arith.addf %42, %45 : vector<8x128xf32>
    %47 = arith.truncf %38 : vector<16x128xf32> to vector<16x128xbf16>
    %c0_22 = arith.constant 0 : index
    %c0_23 = arith.constant 0 : index
    %c0_24 = arith.constant 0 : index
    %48 = vector.load %arg6[%c0_22, %c0_23, %c0_24] : memref<1x128x256xbf16, #tpu.memory_space<vmem>>, vector<1x128x256xbf16>
    %49 = vector.shape_cast %48 : vector<1x128x256xbf16> to vector<128x256xbf16>
    %cst_25 = arith.constant dense<0.000000e+00> : vector<16x256xf32>
    %50 = tpu.matmul %47, %49, %cst_25 {dimension_numbers = #tpu.dot_dimension_numbers<[1], [0], [0], [1], [0, 0, 1, 1], [], []>} : vector<16x128xbf16>, vector<128x256xbf16>, vector<16x256xf32> -> vector<16x256xf32>
    %c0_26 = arith.constant 0 : index
    %c0_27 = arith.constant 0 : index
    %c0_28 = arith.constant 0 : index
    %51 = vector.load %arg7[%c0_26, %c0_27, %c0_28] : memref<1x1x256xf32, #tpu.memory_space<vmem>>, vector<1x1x256xf32>
    %52 = vector.shape_cast %51 : vector<1x1x256xf32> to vector<1x256xf32>
    %53 = vector.broadcast %52 : vector<1x256xf32> to vector<16x256xf32>
    %54 = arith.addf %50, %53 : vector<16x256xf32>
    %55 = vector.extract_strided_slice %54 {offsets = [0, 0], sizes = [16, 128], strides = [1, 1]} : vector<16x256xf32> to vector<16x128xf32>
    %56 = vector.extract_strided_slice %54 {offsets = [0, 128], sizes = [16, 128], strides = [1, 1]} : vector<16x256xf32> to vector<16x128xf32>
    %57 = tpu.iota {dimensions = array<i32: 1>} : vector<8x16xi32>
    %58 = vector.broadcast %39 : i32 to vector<8x16xi32>
    %59 = arith.cmpi slt, %57, %58 : vector<8x16xi32>
    %c0_29 = arith.constant 0 : index
    %c0_30 = arith.constant 0 : index
    %c0_31 = arith.constant 0 : index
    %60 = vector.load %arg8[%c0_29, %c0_30, %c0_31] : memref<1x128x128xbf16, #tpu.memory_space<vmem>>, vector<1x128x128xbf16>
    %61 = vector.shape_cast %60 : vector<1x128x128xbf16> to vector<128x128xbf16>
    %cst_32 = arith.constant 0.000000e+00 : f32
    %62 = vector.broadcast %cst_32 : f32 to vector<8x128xf32>
    %c0_33 = arith.constant 0 : index
    %c0_34 = arith.constant 0 : index
    %c0_35 = arith.constant 0 : index
    %63 = vector.load %arg9[%c0_33, %c0_34, %c0_35] : memref<1x1x128xf32, #tpu.memory_space<vmem>>, vector<1x1x128xf32>
    %64 = vector.shape_cast %63 : vector<1x1x128xf32> to vector<1x128xf32>
    %65 = vector.broadcast %64 : vector<1x128xf32> to vector<8x128xf32>
    %66 = arith.addf %62, %65 : vector<8x128xf32>
    %67 = vector.extract_strided_slice %46 {offsets = [0, 0], sizes = [8, 64], strides = [1, 1]} : vector<8x128xf32> to vector<8x64xf32>
    %68 = vector.extract_strided_slice %55 {offsets = [0, 0], sizes = [16, 64], strides = [1, 1]} : vector<16x128xf32> to vector<16x64xf32>
    %69 = vector.extract_strided_slice %56 {offsets = [0, 0], sizes = [16, 64], strides = [1, 1]} : vector<16x128xf32> to vector<16x64xf32>
    %70 = tpu.transpose %68, [1, 0] : vector<16x64xf32> -> vector<64x16xf32>
    %cst_36 = arith.constant dense<0.000000e+00> : vector<8x16xf32>
    %71 = tpu.matmul %67, %70, %cst_36 {dimension_numbers = #tpu.dot_dimension_numbers<[1], [0], [0], [1], [0, 0, 1, 1], [], []>} : vector<8x64xf32>, vector<64x16xf32>, vector<8x16xf32> -> vector<8x16xf32>
    %cst_37 = arith.constant 1.250000e-01 : f32
    %72 = vector.broadcast %cst_37 : f32 to vector<8x16xf32>
    %73 = arith.mulf %71, %72 : vector<8x16xf32>
    %cst_38 = arith.constant 0xFF800000 : f32
    %74 = vector.broadcast %cst_38 : f32 to vector<8x16xf32>
    %75 = arith.select %59, %73, %74 : vector<8x16xi1>, vector<8x16xf32>
    %cst_39 = arith.constant dense<0xFF800000> : vector<8xf32>
    %76 = vector.multi_reduction <maximumf>, %75, %cst_39 [1] : vector<8x16xf32> to vector<8xf32>
    %77 = vector.shape_cast %76 : vector<8xf32> to vector<8x1xf32>
    %78 = vector.broadcast %77 : vector<8x1xf32> to vector<8x16xf32>
    %79 = arith.subf %75, %78 : vector<8x16xf32>
    %80 = math.exp %79 : vector<8x16xf32>
    %cst_40 = arith.constant dense<0.000000e+00> : vector<8xf32>
    %81 = vector.multi_reduction <add>, %80, %cst_40 [1] : vector<8x16xf32> to vector<8xf32>
    %82 = vector.shape_cast %81 : vector<8xf32> to vector<8x1xf32>
    %83 = tpu.reciprocal %82 {approx = true} : vector<8x1xf32> -> vector<8x1xf32>
    %84 = vector.broadcast %83 : vector<8x1xf32> to vector<8x16xf32>
    %85 = arith.mulf %80, %84 : vector<8x16xf32>
    %cst_41 = arith.constant dense<0.000000e+00> : vector<8x64xf32>
    %86 = tpu.matmul %85, %69, %cst_41 {dimension_numbers = #tpu.dot_dimension_numbers<[1], [0], [0], [1], [0, 0, 1, 1], [], []>} : vector<8x16xf32>, vector<16x64xf32>, vector<8x64xf32> -> vector<8x64xf32>
    %87 = arith.truncf %86 : vector<8x64xf32> to vector<8x64xbf16>
    %88 = vector.extract_strided_slice %61 {offsets = [0, 0], sizes = [64, 128], strides = [1, 1]} : vector<128x128xbf16> to vector<64x128xbf16>
    %cst_42 = arith.constant dense<0.000000e+00> : vector<8x128xf32>
    %89 = tpu.matmul %87, %88, %cst_42 {dimension_numbers = #tpu.dot_dimension_numbers<[1], [0], [0], [1], [0, 0, 1, 1], [], []>} : vector<8x64xbf16>, vector<64x128xbf16>, vector<8x128xf32> -> vector<8x128xf32>
    %90 = arith.addf %66, %89 : vector<8x128xf32>
    %91 = vector.extract_strided_slice %46 {offsets = [0, 64], sizes = [8, 64], strides = [1, 1]} : vector<8x128xf32> to vector<8x64xf32>
    %92 = vector.extract_strided_slice %55 {offsets = [0, 64], sizes = [16, 64], strides = [1, 1]} : vector<16x128xf32> to vector<16x64xf32>
    %93 = vector.extract_strided_slice %56 {offsets = [0, 64], sizes = [16, 64], strides = [1, 1]} : vector<16x128xf32> to vector<16x64xf32>
    %94 = tpu.transpose %92, [1, 0] : vector<16x64xf32> -> vector<64x16xf32>
    %cst_43 = arith.constant dense<0.000000e+00> : vector<8x16xf32>
    %95 = tpu.matmul %91, %94, %cst_43 {dimension_numbers = #tpu.dot_dimension_numbers<[1], [0], [0], [1], [0, 0, 1, 1], [], []>} : vector<8x64xf32>, vector<64x16xf32>, vector<8x16xf32> -> vector<8x16xf32>
    %cst_44 = arith.constant 1.250000e-01 : f32
    %96 = vector.broadcast %cst_44 : f32 to vector<8x16xf32>
    %97 = arith.mulf %95, %96 : vector<8x16xf32>
    %cst_45 = arith.constant 0xFF800000 : f32
    %98 = vector.broadcast %cst_45 : f32 to vector<8x16xf32>
    %99 = arith.select %59, %97, %98 : vector<8x16xi1>, vector<8x16xf32>
    %cst_46 = arith.constant dense<0xFF800000> : vector<8xf32>
    %100 = vector.multi_reduction <maximumf>, %99, %cst_46 [1] : vector<8x16xf32> to vector<8xf32>
    %101 = vector.shape_cast %100 : vector<8xf32> to vector<8x1xf32>
    %102 = vector.broadcast %101 : vector<8x1xf32> to vector<8x16xf32>
    %103 = arith.subf %99, %102 : vector<8x16xf32>
    %104 = math.exp %103 : vector<8x16xf32>
    %cst_47 = arith.constant dense<0.000000e+00> : vector<8xf32>
    %105 = vector.multi_reduction <add>, %104, %cst_47 [1] : vector<8x16xf32> to vector<8xf32>
    %106 = vector.shape_cast %105 : vector<8xf32> to vector<8x1xf32>
    %107 = tpu.reciprocal %106 {approx = true} : vector<8x1xf32> -> vector<8x1xf32>
    %108 = vector.broadcast %107 : vector<8x1xf32> to vector<8x16xf32>
    %109 = arith.mulf %104, %108 : vector<8x16xf32>
    %cst_48 = arith.constant dense<0.000000e+00> : vector<8x64xf32>
    %110 = tpu.matmul %109, %93, %cst_48 {dimension_numbers = #tpu.dot_dimension_numbers<[1], [0], [0], [1], [0, 0, 1, 1], [], []>} : vector<8x16xf32>, vector<16x64xf32>, vector<8x64xf32> -> vector<8x64xf32>
    %111 = arith.truncf %110 : vector<8x64xf32> to vector<8x64xbf16>
    %112 = vector.extract_strided_slice %61 {offsets = [64, 0], sizes = [64, 128], strides = [1, 1]} : vector<128x128xbf16> to vector<64x128xbf16>
    %cst_49 = arith.constant dense<0.000000e+00> : vector<8x128xf32>
    %113 = tpu.matmul %111, %112, %cst_49 {dimension_numbers = #tpu.dot_dimension_numbers<[1], [0], [0], [1], [0, 0, 1, 1], [], []>} : vector<8x64xbf16>, vector<64x128xbf16>, vector<8x128xf32> -> vector<8x128xf32>
    %114 = arith.addf %90, %113 : vector<8x128xf32>
    %115 = arith.addf %3, %114 : vector<8x128xf32>
    %cst_50 = arith.constant dense<0.000000e+00> : vector<8xf32>
    %116 = vector.multi_reduction <add>, %115, %cst_50 [1] : vector<8x128xf32> to vector<8xf32>
    %117 = vector.shape_cast %116 : vector<8xf32> to vector<8x1xf32>
    %cst_51 = arith.constant 1.280000e+02 : f32
    %118 = vector.broadcast %cst_51 : f32 to vector<8x1xf32>
    %119 = arith.divf %117, %118 : vector<8x1xf32>
    %120 = vector.broadcast %119 : vector<8x1xf32> to vector<8x128xf32>
    %121 = arith.subf %115, %120 : vector<8x128xf32>
    %122 = arith.mulf %121, %121 : vector<8x128xf32>
    %cst_52 = arith.constant dense<0.000000e+00> : vector<8xf32>
    %123 = vector.multi_reduction <add>, %122, %cst_52 [1] : vector<8x128xf32> to vector<8xf32>
    %124 = vector.shape_cast %123 : vector<8xf32> to vector<8x1xf32>
    %cst_53 = arith.constant 1.280000e+02 : f32
    %125 = vector.broadcast %cst_53 : f32 to vector<8x1xf32>
    %126 = arith.divf %124, %125 : vector<8x1xf32>
    %127 = vector.broadcast %119 : vector<8x1xf32> to vector<8x128xf32>
    %128 = arith.subf %115, %127 : vector<8x128xf32>
    %cst_54 = arith.constant 9.99999974E-6 : f32
    %129 = vector.broadcast %cst_54 : f32 to vector<8x1xf32>
    %130 = arith.addf %126, %129 : vector<8x1xf32>
    %131 = math.rsqrt %130 : vector<8x1xf32>
    %132 = vector.broadcast %131 : vector<8x1xf32> to vector<8x128xf32>
    %133 = arith.mulf %128, %132 : vector<8x128xf32>
    %134 = arith.truncf %133 : vector<8x128xf32> to vector<8x128xbf16>
    %c0_55 = arith.constant 0 : index
    %c0_56 = arith.constant 0 : index
    %c0_57 = arith.constant 0 : index
    %135 = vector.load %arg10[%c0_55, %c0_56, %c0_57] : memref<1x128x512xbf16, #tpu.memory_space<vmem>>, vector<1x128x512xbf16>
    %136 = vector.shape_cast %135 : vector<1x128x512xbf16> to vector<128x512xbf16>
    %cst_58 = arith.constant dense<0.000000e+00> : vector<8x512xf32>
    %137 = tpu.matmul %134, %136, %cst_58 {dimension_numbers = #tpu.dot_dimension_numbers<[1], [0], [0], [1], [0, 0, 1, 1], [], []>} : vector<8x128xbf16>, vector<128x512xbf16>, vector<8x512xf32> -> vector<8x512xf32>
    %c0_59 = arith.constant 0 : index
    %c0_60 = arith.constant 0 : index
    %c0_61 = arith.constant 0 : index
    %138 = vector.load %arg11[%c0_59, %c0_60, %c0_61] : memref<1x1x512xf32, #tpu.memory_space<vmem>>, vector<1x1x512xf32>
    %139 = vector.shape_cast %138 : vector<1x1x512xf32> to vector<1x512xf32>
    %140 = vector.broadcast %139 : vector<1x512xf32> to vector<8x512xf32>
    %141 = arith.addf %137, %140 : vector<8x512xf32>
    %cst_62 = arith.constant 5.000000e-01 : f32
    %142 = vector.broadcast %cst_62 : f32 to vector<8x512xf32>
    %143 = arith.mulf %142, %141 : vector<8x512xf32>
    %cst_63 = arith.constant 4.471500e-02 : f32
    %144 = vector.broadcast %cst_63 : f32 to vector<8x512xf32>
    %145 = arith.mulf %144, %141 : vector<8x512xf32>
    %146 = arith.mulf %145, %141 : vector<8x512xf32>
    %147 = arith.mulf %146, %141 : vector<8x512xf32>
    %148 = arith.addf %141, %147 : vector<8x512xf32>
    %cst_64 = arith.constant 0.797884583 : f32
    %149 = vector.broadcast %cst_64 : f32 to vector<8x512xf32>
    %150 = arith.mulf %149, %148 : vector<8x512xf32>
    %151 = math.tanh %150 : vector<8x512xf32>
    %cst_65 = arith.constant 1.000000e+00 : f32
    %152 = vector.broadcast %cst_65 : f32 to vector<8x512xf32>
    %153 = arith.addf %152, %151 : vector<8x512xf32>
    %154 = arith.mulf %143, %153 : vector<8x512xf32>
    %155 = arith.truncf %154 : vector<8x512xf32> to vector<8x512xbf16>
    %c0_66 = arith.constant 0 : index
    %c0_67 = arith.constant 0 : index
    %c0_68 = arith.constant 0 : index
    %156 = vector.load %arg12[%c0_66, %c0_67, %c0_68] : memref<1x512x128xbf16, #tpu.memory_space<vmem>>, vector<1x512x128xbf16>
    %157 = vector.shape_cast %156 : vector<1x512x128xbf16> to vector<512x128xbf16>
    %cst_69 = arith.constant dense<0.000000e+00> : vector<8x128xf32>
    %158 = tpu.matmul %155, %157, %cst_69 {dimension_numbers = #tpu.dot_dimension_numbers<[1], [0], [0], [1], [0, 0, 1, 1], [], []>} : vector<8x512xbf16>, vector<512x128xbf16>, vector<8x128xf32> -> vector<8x128xf32>
    %c0_70 = arith.constant 0 : index
    %c0_71 = arith.constant 0 : index
    %c0_72 = arith.constant 0 : index
    %159 = vector.load %arg13[%c0_70, %c0_71, %c0_72] : memref<1x1x128xf32, #tpu.memory_space<vmem>>, vector<1x1x128xf32>
    %160 = vector.shape_cast %159 : vector<1x1x128xf32> to vector<1x128xf32>
    %161 = vector.broadcast %160 : vector<1x128xf32> to vector<8x128xf32>
    %162 = arith.addf %158, %161 : vector<8x128xf32>
    %163 = arith.addf %115, %162 : vector<8x128xf32>
    %c0_73 = arith.constant 0 : index
    %c0_74 = arith.constant 0 : index
    %164 = vector.load %arg15[%c0_73, %c0_74] : memref<8x128xf32, #tpu.memory_space<vmem>>, vector<8x128xf32>
    tpu.vector_store %arg15[%c0_73, %c0_74], %163 {strides = array<i32>} : memref<8x128xf32, #tpu.memory_space<vmem>>, vector<8x128xf32>,
    %c3_i32 = arith.constant 3 : i32
    %165 = arith.cmpi eq, %arg1, %c3_i32 : i32
    %166 = arith.extui %165 : i1 to i32
    %c0_i32_75 = arith.constant 0 : i32
    %167 = arith.cmpi ne, %166, %c0_i32_75 : i32
    scf.if %167 {
      %cst_76 = arith.constant dense<0.000000e+00> : vector<8xf32>
      %168 = vector.multi_reduction <add>, %163, %cst_76 [1] : vector<8x128xf32> to vector<8xf32>
      %169 = vector.shape_cast %168 : vector<8xf32> to vector<8x1xf32>
      %cst_77 = arith.constant 1.280000e+02 : f32
      %170 = vector.broadcast %cst_77 : f32 to vector<8x1xf32>
      %171 = arith.divf %169, %170 : vector<8x1xf32>
      %172 = vector.broadcast %171 : vector<8x1xf32> to vector<8x128xf32>
      %173 = arith.subf %163, %172 : vector<8x128xf32>
      %174 = arith.mulf %173, %173 : vector<8x128xf32>
      %cst_78 = arith.constant dense<0.000000e+00> : vector<8xf32>
      %175 = vector.multi_reduction <add>, %174, %cst_78 [1] : vector<8x128xf32> to vector<8xf32>
      %176 = vector.shape_cast %175 : vector<8xf32> to vector<8x1xf32>
      %cst_79 = arith.constant 1.280000e+02 : f32
      %177 = vector.broadcast %cst_79 : f32 to vector<8x1xf32>
      %178 = arith.divf %176, %177 : vector<8x1xf32>
      %179 = vector.broadcast %171 : vector<8x1xf32> to vector<8x128xf32>
      %180 = arith.subf %163, %179 : vector<8x128xf32>
      %cst_80 = arith.constant 9.99999974E-6 : f32
      %181 = vector.broadcast %cst_80 : f32 to vector<8x1xf32>
      %182 = arith.addf %178, %181 : vector<8x1xf32>
      %183 = math.rsqrt %182 : vector<8x1xf32>
      %184 = vector.broadcast %183 : vector<8x1xf32> to vector<8x128xf32>
      %185 = arith.mulf %180, %184 : vector<8x128xf32>
      %c0_81 = arith.constant 0 : index
      %c0_82 = arith.constant 0 : index
      %c0_83 = arith.constant 0 : index
      %186 = vector.load %arg14[%c0_81, %c0_82, %c0_83] : memref<1x8x128xf32, #tpu.memory_space<vmem>>, vector<1x8x128xf32>
      %187 = vector.shape_cast %186 : vector<1x8x128xf32> to vector<8x128xf32>
      %188 = vector.shape_cast %185 : vector<8x128xf32> to vector<1x8x128xf32>
      tpu.vector_store %arg14[%c0_81, %c0_82, %c0_83], %188 {strides = array<i32>} : memref<1x8x128xf32, #tpu.memory_space<vmem>>, vector<1x8x128xf32>,
    } else {
    }
    return
  }
  func.func @transform_0(%arg0: i32, %arg1: i32) -> (i32, i32, i32) {
    %c0_i32 = arith.constant 0 : i32
    %c0_i32_0 = arith.constant 0 : i32
    %c0_i32_1 = arith.constant 0 : i32
    return %arg0, %c0_i32, %c0_i32_0 : i32, i32, i32
  }
  func.func @transform_1(%arg0: i32, %arg1: i32) -> (i32, i32, i32) {
    %c0_i32 = arith.constant 0 : i32
    %c0_i32_0 = arith.constant 0 : i32
    %c0_i32_1 = arith.constant 0 : i32
    return %arg0, %c0_i32, %c0_i32_0 : i32, i32, i32
  }
  func.func @transform_2(%arg0: i32, %arg1: i32) -> (i32, i32, i32) {
    %c0_i32 = arith.constant 0 : i32
    %c0_i32_0 = arith.constant 0 : i32
    %c0_i32_1 = arith.constant 0 : i32
    return %arg1, %c0_i32, %c0_i32_0 : i32, i32, i32
  }
  func.func @transform_3(%arg0: i32, %arg1: i32) -> (i32, i32, i32) {
    %c0_i32 = arith.constant 0 : i32
    %c0_i32_0 = arith.constant 0 : i32
    %c0_i32_1 = arith.constant 0 : i32
    return %arg1, %c0_i32, %c0_i32_0 : i32, i32, i32
  }
  func.func @transform_4(%arg0: i32, %arg1: i32) -> (i32, i32, i32) {
    %c0_i32 = arith.constant 0 : i32
    %c0_i32_0 = arith.constant 0 : i32
    %c0_i32_1 = arith.constant 0 : i32
    return %arg1, %c0_i32, %c0_i32_0 : i32, i32, i32
  }
  func.func @transform_5(%arg0: i32, %arg1: i32) -> (i32, i32, i32) {
    %c0_i32 = arith.constant 0 : i32
    %c0_i32_0 = arith.constant 0 : i32
    %c0_i32_1 = arith.constant 0 : i32
    return %arg1, %c0_i32, %c0_i32_0 : i32, i32, i32
  }
  func.func @transform_6(%arg0: i32, %arg1: i32) -> (i32, i32, i32) {
    %c0_i32 = arith.constant 0 : i32
    %c0_i32_0 = arith.constant 0 : i32
    %c0_i32_1 = arith.constant 0 : i32
    return %arg1, %c0_i32, %c0_i32_0 : i32, i32, i32
  }
  func.func @transform_7(%arg0: i32, %arg1: i32) -> (i32, i32, i32) {
    %c0_i32 = arith.constant 0 : i32
    %c0_i32_0 = arith.constant 0 : i32
    %c0_i32_1 = arith.constant 0 : i32
    return %arg1, %c0_i32, %c0_i32_0 : i32, i32, i32
  }
  func.func @transform_8(%arg0: i32, %arg1: i32) -> (i32, i32, i32) {
    %c0_i32 = arith.constant 0 : i32
    %c0_i32_0 = arith.constant 0 : i32
    %c0_i32_1 = arith.constant 0 : i32
    return %arg1, %c0_i32, %c0_i32_0 : i32, i32, i32
  }
  func.func @transform_9(%arg0: i32, %arg1: i32) -> (i32, i32, i32) {
    %c0_i32 = arith.constant 0 : i32
    %c0_i32_0 = arith.constant 0 : i32
    %c0_i32_1 = arith.constant 0 : i32
    return %arg1, %c0_i32, %c0_i32_0 : i32, i32, i32
  }
  func.func @transform_10(%arg0: i32, %arg1: i32) -> (i32, i32, i32) {
    %c0_i32 = arith.constant 0 : i32
    %c0_i32_0 = arith.constant 0 : i32
    %c0_i32_1 = arith.constant 0 : i32
    return %arg1, %c0_i32, %c0_i32_0 : i32, i32, i32
  }
  func.func @transform_11(%arg0: i32, %arg1: i32) -> (i32, i32, i32) {
    %c0_i32 = arith.constant 0 : i32
    %c0_i32_0 = arith.constant 0 : i32
    %c0_i32_1 = arith.constant 0 : i32
    return %arg1, %c0_i32, %c0_i32_0 : i32, i32, i32
  }
  func.func @transform_12(%arg0: i32, %arg1: i32) -> (i32, i32, i32) {
    %c0_i32 = arith.constant 0 : i32
    %c0_i32_0 = arith.constant 0 : i32
    %c0_i32_1 = arith.constant 0 : i32
    return %arg0, %c0_i32, %c0_i32_0 : i32, i32, i32
  }
}

</mosaic_0001>

<llo_original>
// kernel: tpu_custom_call.1
$region0: #{tpu_custom_call.1}
  #allocation0 [shape = 'u32[]', space=smem, size = 0x4, offset = 0x4, fixed_abs, tag = 'smem constant byte address 0x4 - core index']
  #allocation1 [shape = 'u32[144,128]{1,0:T(1,128)}', space=vmem, size = 0x12000, scoped, tag = 'internal scratch']
  #allocation2 [shape = 'f32[8,128]{1,0:T(8,128)}', space=vmem, size = 0x1000, scoped, tag = 'scratch operand']
  %s0 = inlined_call_operand.hbm [shape: f32[2,8,128], index: 0, kind: input, shape index: {}]
  %s1 = inlined_call_operand.hbm [shape: f32[2,16,128], index: 1, kind: input, shape index: {}]
  %s2 = inlined_call_operand.hbm [shape: bf16[4,128,128], index: 2, kind: input, shape index: {}]
  %s3 = inlined_call_operand.hbm [shape: f32[4,1,128], index: 3, kind: input, shape index: {}]
  %s4 = inlined_call_operand.hbm [shape: bf16[4,128,256], index: 4, kind: input, shape index: {}]
  %s5 = inlined_call_operand.hbm [shape: f32[4,1,256], index: 5, kind: input, shape index: {}]
  %s6 = inlined_call_operand.hbm [shape: bf16[4,128,128], index: 6, kind: input, shape index: {}]
  %s7 = inlined_call_operand.hbm [shape: f32[4,1,128], index: 7, kind: input, shape index: {}]
  %s8 = inlined_call_operand.hbm [shape: bf16[4,128,512], index: 8, kind: input, shape index: {}]
  %s9 = inlined_call_operand.vmem [shape: f32[4,1,512], index: 9, kind: input, shape index: {}]
  %s10 = inlined_call_operand.hbm [shape: bf16[4,512,128], index: 10, kind: input, shape index: {}]
  %s11 = inlined_call_operand.vmem [shape: f32[4,1,128], index: 11, kind: input, shape index: {}]
  %s12 = inlined_call_operand.hbm [shape: f32[2,8,128], index: 12, kind: output, shape index: {}]
  %s13 = sld [smem:[#allocation0]]
  $region129: #{tpu_custom_call.1} parent=0
    _
  %s15 = ssub.s32 1, %s13
  %s16 = scalar_select 0, %s15, %s13
  $region1: #{tpu_custom_call.1} parent=0
    #allocation3 [shape = 'u8[8192]{0}', space=vmem, size = 0x2000, scoped, tag = 'input window, operand 0']
    #allocation4 [shape = 's32[2]{0}', space=sflag, size = 0x8, scoped, tag = 'scoped memory for tpu_custom_call.1']
    #allocation5 [shape = 's32[2]{0}', space=sflag, size = 0x8, scoped, tag = 'scoped memory for tpu_custom_call.1']
    #allocation6 [shape = 'u8[16384]{0}', space=vmem, size = 0x4000, scoped, tag = 'input window, operand 1']
    #allocation7 [shape = 's32[2]{0}', space=sflag, size = 0x8, scoped, tag = 'scoped memory for tpu_custom_call.1']
    #allocation8 [shape = 'u8[65536]{0}', space=vmem, size = 0x10000, scoped, tag = 'input window, operand 2']
    #allocation9 [shape = 'u8[1024]{0}', space=vmem, size = 0x400, scoped, tag = 'input window, operand 3']
    #allocation10 [shape = 's32[2]{0}', space=sflag, size = 0x8, scoped, tag = 'scoped memory for tpu_custom_call.1']
    #allocation11 [shape = 'u8[131072]{0}', space=vmem, size = 0x20000, scoped, tag = 'input window, operand 4']
    #allocation12 [shape = 'u8[2048]{0}', space=vmem, size = 0x800, scoped, tag = 'input window, operand 5']
    #allocation13 [shape = 's32[2]{0}', space=sflag, size = 0x8, scoped, tag = 'scoped memory for tpu_custom_call.1']
    #allocation14 [shape = 'u8[65536]{0}', space=vmem, size = 0x10000, scoped, tag = 'input window, operand 6']
    #allocation15 [shape = 'u8[1024]{0}', space=vmem, size = 0x400, scoped, tag = 'input window, operand 7']
    #allocation16 [shape = 's32[2]{0}', space=sflag, size = 0x8, scoped, tag = 'scoped memory for tpu_custom_call.1']
    #allocation17 [shape = 'u8[262144]{0}', space=vmem, size = 0x40000, scoped, tag = 'input window, operand 8']
    #allocation18 [shape = 'u8[262144]{0}', space=vmem, size = 0x40000, scoped, tag = 'input window, operand 10']
    #allocation19 [shape = 's32[2]{0}', space=sflag, size = 0x8, scoped, tag = 'scoped memory for tpu_custom_call.1']
    #allocation20 [shape = 'u8[8192]{0}', space=vmem, size = 0x2000, scoped, tag = 'output window, operand 0']
    %17 = vsyncpa [#allocation4], 0
    %s18 = scalar_lea.sflag [#allocation4], 1
    %19 = vsyncpa %s18, 0
    %20 = vsyncpa [#allocation7], 0
    %s21 = scalar_lea.sflag [#allocation7], 1
    %22 = vsyncpa %s21, 0
    %23 = vsyncpa [#allocation10], 0
    %s24 = scalar_lea.sflag [#allocation10], 1
    %25 = vsyncpa %s24, 0
    %26 = vsyncpa [#allocation13], 0
    %s27 = scalar_lea.sflag [#allocation13], 1
    %28 = vsyncpa %s27, 0
    %29 = vsyncpa [#allocation16], 0
    %s30 = scalar_lea.sflag [#allocation16], 1
    %31 = vsyncpa %s30, 0
    %32 = vsyncpa [#allocation19], 0
    %s33 = scalar_lea.sflag [#allocation19], 1
    %34 = vsyncpa %s33, 0
    %35 = vsyncpa [#allocation5], 0
    %s36 = scalar_lea.sflag [#allocation5], 1
    %37 = vsyncpa %s36, 0
    loop: start=0, step=1, limit=10
    $region2: #{tpu_custom_call.1} parent=1 // loop_pre_header
      _
    $region3: #{tpu_custom_call.1} parent=1 // loop_header
      %s39 = sphi 0, %s43
      %p40 = scmp.ge.s32.totalorder %s39, 10
      %s46 = sphi 0, %s58
      %s47 = sphi 0, %s54
      %s48 = sphi 0, %s46
      %s49 = sphi 0, %s47
      %s50 = sphi 0, %s48
      %s51 = sphi 0, %s49
      %s61 = sphi 0, %s63
      %s64 = sphi 0, %s61
      %s65 = sphi 0, %s64
      %s81 = sphi 0, %s65
      %s87 = sphi 0, %s89
      %s90 = sphi 0, %s87
      %s91 = sphi 0, %s90
      %s107 = sphi 0, %s91
      %s113 = sphi 0, %s115
      %s116 = sphi 0, %s113
      %s117 = sphi 0, %s116
      %s133 = sphi 0, %s117
      %s139 = sphi 0, %s141
      %s142 = sphi 0, %s139
      %s143 = sphi 0, %s142
      %s159 = sphi 0, %s143
      %s165 = sphi 0, %s167
      %s168 = sphi 0, %s165
      %s169 = sphi 0, %s168
      %s185 = sphi 0, %s169
      %s191 = sphi 0, %s193
      %s194 = sphi 0, %s191
      %s195 = sphi 0, %s194
      %s211 = sphi 0, %s195
      %s217 = sphi 0, %s219
      %s220 = sphi 0, %s217
      %s221 = sphi 0, %s220
      %s237 = sphi 0, %s221
      %s243 = sphi 0, %s245
      %s246 = sphi 0, %s243
      %s247 = sphi 0, %s246
      %s263 = sphi 0, %s247
      %s269 = sphi 0, %s271
      %s272 = sphi 0, %s269
      %s273 = sphi 0, %s272
      %s289 = sphi 0, %s273
      %s295 = sphi 0, %s297
      %s298 = sphi 0, %s295
      %s299 = sphi 0, %s298
      %s315 = sphi 0, %s299
      %s321 = sphi 0, %s323
      %s324 = sphi 0, %s321
      %s325 = sphi 0, %s324
      %s341 = sphi 0, %s325
      %s347 = sphi 0, %s349
      %s350 = sphi 0, %s347
      %s351 = sphi 0, %s350
      %s367 = sphi 0, %s351
      %s373 = sphi 0, %s375
      %s376 = sphi 0, %s373
      %s377 = sphi 0, %s376
      %s393 = sphi 0, %s377
    $region4: #{tpu_custom_call.1} parent=1 // loop_header_branch
      %42 = sbr.rel (%p40) target = $region8
    $region5: #{tpu_custom_call.1} parent=1 // loop_body
      %s44 = ssub.s32 %s39, 1
      %s45 = ssub.s32 %s39, 2
      %s52 = sadd.s32 1, %s47
      %p53 = scmp.ge.s32.totalorder %s52, 4
      %s54 = scalar_select %p53, 0, %s52
      %s55 = sadd.s32 1, %s46
      %s56 = scalar_select %p53, %s55, %s46
      %p57 = scmp.ge.s32.totalorder %s56, 2
      %s58 = scalar_select %p57, 0, %s56
      %s59 = ssub.s32 %s46, %s58
      %p60 = scmp.eq.s32.totalorder %s59, 0
      %s62 = sadd.s32 %s61, 1
      %s63 = scalar_select %p60, %s61, %s62
      %p66 = pneg %p60
      %p67 = scmp.eq.s32.totalorder %s39, 7
      %p68 = por %p66, %p67
      %p69 = scmp.ne.s32.totalorder %s61, %s64
      %p70 = scmp.eq.s32.totalorder %s39, 0
      %p71 = por %p69, %p70
      %p72 = scmp.ne.s32.totalorder %s61, %s64
      %p73 = scmp.eq.s32.totalorder %s44, 7
      %p74 = por %p72, %p73
      %p75 = scmp.ne.s32.totalorder %s64, %s65
      %p76 = scmp.eq.s32.totalorder %s44, 0
      %p77 = por %p75, %p76
      %p78 = scmp.ne.s32.totalorder %s64, %s65
      %p79 = scmp.eq.s32.totalorder %s45, 7
      %p80 = por %p78, %p79
      %p82 = scmp.ne.s32.totalorder %s65, %s81
      %p83 = scmp.eq.s32.totalorder %s45, 0
      %p84 = por %p82, %p83
      %s85 = ssub.s32 %s46, %s58
      %p86 = scmp.eq.s32.totalorder %s85, 0
      %s88 = sadd.s32 %s87, 1
      %s89 = scalar_select %p86, %s87, %s88
      %p92 = pneg %p86
      %p93 = scmp.eq.s32.totalorder %s39, 7
      %p94 = por %p92, %p93
      %p95 = scmp.ne.s32.totalorder %s87, %s90
      %p96 = scmp.eq.s32.totalorder %s39, 0
      %p97 = por %p95, %p96
      %p98 = scmp.ne.s32.totalorder %s87, %s90
      %p99 = scmp.eq.s32.totalorder %s44, 7
      %p100 = por %p98, %p99
      %p101 = scmp.ne.s32.totalorder %s90, %s91
      %p102 = scmp.eq.s32.totalorder %s44, 0
      %p103 = por %p101, %p102
      %p104 = scmp.ne.s32.totalorder %s90, %s91
      %p105 = scmp.eq.s32.totalorder %s45, 7
      %p106 = por %p104, %p105
      %p108 = scmp.ne.s32.totalorder %s91, %s107
      %p109 = scmp.eq.s32.totalorder %s45, 0
      %p110 = por %p108, %p109
      %s111 = ssub.s32 %s47, %s54
      %p112 = scmp.eq.s32.totalorder %s111, 0
      %s114 = sadd.s32 %s113, 1
      %s115 = scalar_select %p112, %s113, %s114
      %p118 = pneg %p112
      %p119 = scmp.eq.s32.totalorder %s39, 7
      %p120 = por %p118, %p119
      %p121 = scmp.ne.s32.totalorder %s113, %s116
      %p122 = scmp.eq.s32.totalorder %s39, 0
      %p123 = por %p121, %p122
      %p124 = scmp.ne.s32.totalorder %s113, %s116
      %p125 = scmp.eq.s32.totalorder %s44, 7
      %p126 = por %p124, %p125
      %p127 = scmp.ne.s32.totalorder %s116, %s117
      %p128 = scmp.eq.s32.totalorder %s44, 0
      %p129 = por %p127, %p128
      %p130 = scmp.ne.s32.totalorder %s116, %s117
      %p131 = scmp.eq.s32.totalorder %s45, 7
      %p132 = por %p130, %p131
      %p134 = scmp.ne.s32.totalorder %s117, %s133
      %p135 = scmp.eq.s32.totalorder %s45, 0
      %p136 = por %p134, %p135
      %s137 = ssub.s32 %s47, %s54
      %p138 = scmp.eq.s32.totalorder %s137, 0
      %s140 = sadd.s32 %s139, 1
      %s141 = scalar_select %p138, %s139, %s140
      %p144 = pneg %p138
      %p145 = scmp.eq.s32.totalorder %s39, 7
      %p146 = por %p144, %p145
      %p147 = scmp.ne.s32.totalorder %s139, %s142
      %p148 = scmp.eq.s32.totalorder %s39, 0
      %p149 = por %p147, %p148
      %p150 = scmp.ne.s32.totalorder %s139, %s142
      %p151 = scmp.eq.s32.totalorder %s44, 7
      %p152 = por %p150, %p151
      %p153 = scmp.ne.s32.totalorder %s142, %s143
      %p154 = scmp.eq.s32.totalorder %s44, 0
      %p155 = por %p153, %p154
      %p156 = scmp.ne.s32.totalorder %s142, %s143
      %p157 = scmp.eq.s32.totalorder %s45, 7
      %p158 = por %p156, %p157
      %p160 = scmp.ne.s32.totalorder %s143, %s159
      %p161 = scmp.eq.s32.totalorder %s45, 0
      %p162 = por %p160, %p161
      %s163 = ssub.s32 %s47, %s54
      %p164 = scmp.eq.s32.totalorder %s163, 0
      %s166 = sadd.s32 %s165, 1
      %s167 = scalar_select %p164, %s165, %s166
      %p170 = pneg %p164
      %p171 = scmp.eq.s32.totalorder %s39, 7
      %p172 = por %p170, %p171
      %p173 = scmp.ne.s32.totalorder %s165, %s168
      %p174 = scmp.eq.s32.totalorder %s39, 0
      %p175 = por %p173, %p174
      %p176 = scmp.ne.s32.totalorder %s165, %s168
      %p177 = scmp.eq.s32.totalorder %s44, 7
      %p178 = por %p176, %p177
      %p179 = scmp.ne.s32.totalorder %s168, %s169
      %p180 = scmp.eq.s32.totalorder %s44, 0
      %p181 = por %p179, %p180
      %p182 = scmp.ne.s32.totalorder %s168, %s169
      %p183 = scmp.eq.s32.totalorder %s45, 7
      %p184 = por %p182, %p183
      %p186 = scmp.ne.s32.totalorder %s169, %s185
      %p187 = scmp.eq.s32.totalorder %s45, 0
      %p188 = por %p186, %p187
      %s189 = ssub.s32 %s47, %s54
      %p190 = scmp.eq.s32.totalorder %s189, 0
      %s192 = sadd.s32 %s191, 1
      %s193 = scalar_select %p190, %s191, %s192
      %p196 = pneg %p190
      %p197 = scmp.eq.s32.totalorder %s39, 7
      %p198 = por %p196, %p197
      %p199 = scmp.ne.s32.totalorder %s191, %s194
      %p200 = scmp.eq.s32.totalorder %s39, 0
      %p201 = por %p199, %p200
      %p202 = scmp.ne.s32.totalorder %s191, %s194
      %p203 = scmp.eq.s32.totalorder %s44, 7
      %p204 = por %p202, %p203
      %p205 = scmp.ne.s32.totalorder %s194, %s195
      %p206 = scmp.eq.s32.totalorder %s44, 0
      %p207 = por %p205, %p206
      %p208 = scmp.ne.s32.totalorder %s194, %s195
      %p209 = scmp.eq.s32.totalorder %s45, 7
      %p210 = por %p208, %p209
      %p212 = scmp.ne.s32.totalorder %s195, %s211
      %p213 = scmp.eq.s32.totalorder %s45, 0
      %p214 = por %p212, %p213
      %s215 = ssub.s32 %s47, %s54
      %p216 = scmp.eq.s32.totalorder %s215, 0
      %s218 = sadd.s32 %s217, 1
      %s219 = scalar_select %p216, %s217, %s218
      %p222 = pneg %p216
      %p223 = scmp.eq.s32.totalorder %s39, 7
      %p224 = por %p222, %p223
      %p225 = scmp.ne.s32.totalorder %s217, %s220
      %p226 = scmp.eq.s32.totalorder %s39, 0
      %p227 = por %p225, %p226
      %p228 = scmp.ne.s32.totalorder %s217, %s220
      %p229 = scmp.eq.s32.totalorder %s44, 7
      %p230 = por %p228, %p229
      %p231 = scmp.ne.s32.totalorder %s220, %s221
      %p232 = scmp.eq.s32.totalorder %s44, 0
      %p233 = por %p231, %p232
      %p234 = scmp.ne.s32.totalorder %s220, %s221
      %p235 = scmp.eq.s32.totalorder %s45, 7
      %p236 = por %p234, %p235
      %p238 = scmp.ne.s32.totalorder %s221, %s237
      %p239 = scmp.eq.s32.totalorder %s45, 0
      %p240 = por %p238, %p239
      %s241 = ssub.s32 %s47, %s54
      %p242 = scmp.eq.s32.totalorder %s241, 0
      %s244 = sadd.s32 %s243, 1
      %s245 = scalar_select %p242, %s243, %s244
      %p248 = pneg %p242
      %p249 = scmp.eq.s32.totalorder %s39, 7
      %p250 = por %p248, %p249
      %p251 = scmp.ne.s32.totalorder %s243, %s246
      %p252 = scmp.eq.s32.totalorder %s39, 0
      %p253 = por %p251, %p252
      %p254 = scmp.ne.s32.totalorder %s243, %s246
      %p255 = scmp.eq.s32.totalorder %s44, 7
      %p256 = por %p254, %p255
      %p257 = scmp.ne.s32.totalorder %s246, %s247
      %p258 = scmp.eq.s32.totalorder %s44, 0
      %p259 = por %p257, %p258
      %p260 = scmp.ne.s32.totalorder %s246, %s247
      %p261 = scmp.eq.s32.totalorder %s45, 7
      %p262 = por %p260, %p261
      %p264 = scmp.ne.s32.totalorder %s247, %s263
      %p265 = scmp.eq.s32.totalorder %s45, 0
      %p266 = por %p264, %p265
      %s267 = ssub.s32 %s47, %s54
      %p268 = scmp.eq.s32.totalorder %s267, 0
      %s270 = sadd.s32 %s269, 1
      %s271 = scalar_select %p268, %s269, %s270
      %p274 = pneg %p268
      %p275 = scmp.eq.s32.totalorder %s39, 7
      %p276 = por %p274, %p275
      %p277 = scmp.ne.s32.totalorder %s269, %s272
      %p278 = scmp.eq.s32.totalorder %s39, 0
      %p279 = por %p277, %p278
      %p280 = scmp.ne.s32.totalorder %s269, %s272
      %p281 = scmp.eq.s32.totalorder %s44, 7
      %p282 = por %p280, %p281
      %p283 = scmp.ne.s32.totalorder %s272, %s273
      %p284 = scmp.eq.s32.totalorder %s44, 0
      %p285 = por %p283, %p284
      %p286 = scmp.ne.s32.totalorder %s272, %s273
      %p287 = scmp.eq.s32.totalorder %s45, 7
      %p288 = por %p286, %p287
      %p290 = scmp.ne.s32.totalorder %s273, %s289
      %p291 = scmp.eq.s32.totalorder %s45, 0
      %p292 = por %p290, %p291
      %s293 = ssub.s32 %s47, %s54
      %p294 = scmp.eq.s32.totalorder %s293, 0
      %s296 = sadd.s32 %s295, 1
      %s297 = scalar_select %p294, %s295, %s296
      %p300 = pneg %p294
      %p301 = scmp.eq.s32.totalorder %s39, 7
      %p302 = por %p300, %p301
      %p303 = scmp.ne.s32.totalorder %s295, %s298
      %p304 = scmp.eq.s32.totalorder %s39, 0
      %p305 = por %p303, %p304
      %p306 = scmp.ne.s32.totalorder %s295, %s298
      %p307 = scmp.eq.s32.totalorder %s44, 7
      %p308 = por %p306, %p307
      %p309 = scmp.ne.s32.totalorder %s298, %s299
      %p310 = scmp.eq.s32.totalorder %s44, 0
      %p311 = por %p309, %p310
      %p312 = scmp.ne.s32.totalorder %s298, %s299
      %p313 = scmp.eq.s32.totalorder %s45, 7
      %p314 = por %p312, %p313
      %p316 = scmp.ne.s32.totalorder %s299, %s315
      %p317 = scmp.eq.s32.totalorder %s45, 0
      %p318 = por %p316, %p317
      %s319 = ssub.s32 %s47, %s54
      %p320 = scmp.eq.s32.totalorder %s319, 0
      %s322 = sadd.s32 %s321, 1
      %s323 = scalar_select %p320, %s321, %s322
      %p326 = pneg %p320
      %p327 = scmp.eq.s32.totalorder %s39, 7
      %p328 = por %p326, %p327
      %p329 = scmp.ne.s32.totalorder %s321, %s324
      %p330 = scmp.eq.s32.totalorder %s39, 0
      %p331 = por %p329, %p330
      %p332 = scmp.ne.s32.totalorder %s321, %s324
      %p333 = scmp.eq.s32.totalorder %s44, 7
      %p334 = por %p332, %p333
      %p335 = scmp.ne.s32.totalorder %s324, %s325
      %p336 = scmp.eq.s32.totalorder %s44, 0
      %p337 = por %p335, %p336
      %p338 = scmp.ne.s32.totalorder %s324, %s325
      %p339 = scmp.eq.s32.totalorder %s45, 7
      %p340 = por %p338, %p339
      %p342 = scmp.ne.s32.totalorder %s325, %s341
      %p343 = scmp.eq.s32.totalorder %s45, 0
      %p344 = por %p342, %p343
      %s345 = ssub.s32 %s47, %s54
      %p346 = scmp.eq.s32.totalorder %s345, 0
      %s348 = sadd.s32 %s347, 1
      %s349 = scalar_select %p346, %s347, %s348
      %p352 = pneg %p346
      %p353 = scmp.eq.s32.totalorder %s39, 7
      %p354 = por %p352, %p353
      %p355 = scmp.ne.s32.totalorder %s347, %s350
      %p356 = scmp.eq.s32.totalorder %s39, 0
      %p357 = por %p355, %p356
      %p358 = scmp.ne.s32.totalorder %s347, %s350
      %p359 = scmp.eq.s32.totalorder %s44, 7
      %p360 = por %p358, %p359
      %p361 = scmp.ne.s32.totalorder %s350, %s351
      %p362 = scmp.eq.s32.totalorder %s44, 0
      %p363 = por %p361, %p362
      %p364 = scmp.ne.s32.totalorder %s350, %s351
      %p365 = scmp.eq.s32.totalorder %s45, 7
      %p366 = por %p364, %p365
      %p368 = scmp.ne.s32.totalorder %s351, %s367
      %p369 = scmp.eq.s32.totalorder %s45, 0
      %p370 = por %p368, %p369
      %s371 = ssub.s32 %s46, %s58
      %p372 = scmp.eq.s32.totalorder %s371, 0
      %s374 = sadd.s32 %s373, 1
      %s375 = scalar_select %p372, %s373, %s374
      %p378 = pneg %p372
      %p379 = scmp.eq.s32.totalorder %s39, 7
      %p380 = por %p378, %p379
      %p381 = scmp.ne.s32.totalorder %s373, %s376
      %p382 = scmp.eq.s32.totalorder %s39, 0
      %p383 = por %p381, %p382
      %p384 = scmp.ne.s32.totalorder %s373, %s376
      %p385 = scmp.eq.s32.totalorder %s44, 7
      %p386 = por %p384, %p385
      %p387 = scmp.ne.s32.totalorder %s376, %s377
      %p388 = scmp.eq.s32.totalorder %s44, 0
      %p389 = por %p387, %p388
      %p390 = scmp.ne.s32.totalorder %s376, %s377
      %p391 = scmp.eq.s32.totalorder %s45, 7
      %p392 = por %p390, %p391
      %p394 = scmp.ne.s32.totalorder %s377, %s393
      %p395 = scmp.eq.s32.totalorder %s45, 0
      %p396 = por %p394, %p395
      %p397 = scmp.le.s32.totalorder 1, %s39
      %p398 = scmp.lt.s32.totalorder %s39, 9
      %p399 = pnand %p397, %p398
      %p400 = pneg %p399
      // Predicated region
      $region9: #{tpu_custom_call.1} parent=5 // pred_check
        _
      $region10: #{tpu_custom_call.1} parent=5 // pred_check_branch
        %402 = sbr.rel (%p399) target = $region12
      $region11: #{tpu_custom_call.1} parent=5 // pred_region
        %s403 = ssub.s32 %s39, 1
      $region12: #{tpu_custom_call.1} parent=5 // pred_fallthru
        _
      %p404 = scmp.lt.s32.totalorder %s39, 8
      // Predicated region
      $region13: #{tpu_custom_call.1} parent=5 // pred_check
        %p405 = pneg %p404
      $region14: #{tpu_custom_call.1} parent=5 // pred_check_branch
        %407 = sbr.rel (%p405) target = $region16
      $region15: #{tpu_custom_call.1} parent=5 // pred_region
        // Predicated region
        $region17: #{tpu_custom_call.1} parent=15 // pred_check
          %p408 = pneg %p71
        $region18: #{tpu_custom_call.1} parent=15 // pred_check_branch
          %410 = sbr.rel (%p408) target = $region20
        $region19: #{tpu_custom_call.1} parent=15 // pred_region
          %s411 = sand.u32 %s61, 1
          %s412 = scalar_lea.sflag [#allocation4], %s411
          %s413 = sand.u32 %s61, 1
          %s414 = smul.addr %s413, 8
          %s415 = scalar_lea.vmem [#allocation3], %s414
          %s417 = ssub.s32 128, 128
          %418 = vsyncadd %s412, %s417
          %s419 = smul.addr %s46, 128
          %s420 = scalar_lea.hbm %s0, %s419
          %s422 = sshll.u32 %s415, 4
          %s423 = int_to_ptr.vmem [resolvable:$true] %s422
          %425 = dma.hbm_to_vmem [thread:$0]  %s420, 128, %s423, %s412
        $region20: #{tpu_custom_call.1} parent=15 // pred_fallthru
          _
        // Predicated region
        $region21: #{tpu_custom_call.1} parent=15 // pred_check
          %p426 = pneg %p97
        $region22: #{tpu_custom_call.1} parent=15 // pred_check_branch
          %428 = sbr.rel (%p426) target = $region24
        $region23: #{tpu_custom_call.1} parent=15 // pred_region
          %s429 = sand.u32 %s39, 1
          %s430 = scalar_lea.sflag [#allocation7], %s429
          %s431 = sand.u32 %s87, 1
          %s432 = smul.addr %s431, 16
          %s433 = scalar_lea.vmem [#allocation6], %s432
          %s435 = ssub.s32 256, 256
          %436 = vsyncadd %s430, %s435
          %s437 = smul.addr %s46, 2
          %s438 = smul.addr %s437, 128
          %s439 = scalar_lea.hbm %s1, %s438
          %s440 = sshll.u32 %s433, 4
          %s441 = int_to_ptr.vmem [resolvable:$true] %s440
          %446 = dma.hbm_to_vmem [thread:$0]  %s439, 256, %s441, %s430, 128, 128, 8
        $region24: #{tpu_custom_call.1} parent=15 // pred_fallthru
          _
        // Predicated region
        $region25: #{tpu_custom_call.1} parent=15 // pred_check
          %p447 = pneg %p123
        $region26: #{tpu_custom_call.1} parent=15 // pred_check_branch
          %449 = sbr.rel (%p447) target = $region28
        $region27: #{tpu_custom_call.1} parent=15 // pred_region
          %s450 = sand.u32 %s39, 1
          %s451 = scalar_lea.sflag [#allocation7], %s450
          %s452 = sand.u32 %s113, 1
          %s453 = smul.addr %s452, 64
          %s454 = scalar_lea.vmem [#allocation8], %s453
          %s456 = ssub.s32 1024, 1024
          %457 = vsyncadd %s451, %s456
          %s458 = smul.addr %s47, 16
          %s459 = smul.addr %s458, 64
          %s460 = scalar_lea.hbm %s2, %s459
          %s461 = sshll.u32 %s454, 4
          %s462 = int_to_ptr.vmem [resolvable:$true] %s461
          %467 = dma.hbm_to_vmem [thread:$0]  %s460, 1024, %s462, %s451, 64, 64, 4
        $region28: #{tpu_custom_call.1} parent=15 // pred_fallthru
          _
        // Predicated region
        $region29: #{tpu_custom_call.1} parent=15 // pred_check
          %p468 = pneg %p149
        $region30: #{tpu_custom_call.1} parent=15 // pred_check_branch
          %470 = sbr.rel (%p468) target = $region32
        $region31: #{tpu_custom_call.1} parent=15 // pred_region
          %s471 = sand.u32 %s39, 1
          %s472 = scalar_lea.sflag [#allocation10], %s471
          %s473 = sand.u32 %s139, 1
          %s474 = scalar_lea.vmem [#allocation9], %s473
          %s476 = ssub.s32 16, 16
          %477 = vsyncadd %s472, %s476
          %s478 = smul.addr %s47, 16
          %s479 = scalar_lea.hbm %s3, %s478
          %s481 = sshll.u32 %s474, 4
          %s482 = int_to_ptr.vmem [resolvable:$true] %s481
          %484 = dma.hbm_to_vmem [thread:$0]  %s479, 16, %s482, %s472
        $region32: #{tpu_custom_call.1} parent=15 // pred_fallthru
          _
        // Predicated region
        $region33: #{tpu_custom_call.1} parent=15 // pred_check
          %p485 = pneg %p175
        $region34: #{tpu_custom_call.1} parent=15 // pred_check_branch
          %487 = sbr.rel (%p485) target = $region36
        $region35: #{tpu_custom_call.1} parent=15 // pred_region
          %s488 = sand.u32 %s39, 1
          %s489 = scalar_lea.sflag [#allocation10], %s488
          %s490 = sand.u32 %s165, 1
          %s491 = smul.addr %s490, 128
          %s492 = scalar_lea.vmem [#allocation11], %s491
          %s494 = ssub.s32 2048, 2048
          %495 = vsyncadd %s489, %s494
          %s496 = smul.addr %s47, 32
          %s497 = smul.addr %s496, 64
          %s498 = scalar_lea.hbm %s4, %s497
          %s499 = sshll.u32 %s492, 4
          %s500 = int_to_ptr.vmem [resolvable:$true] %s499
          %505 = dma.hbm_to_vmem [thread:$0]  %s498, 2048, %s500, %s489, 128, 128, 8
        $region36: #{tpu_custom_call.1} parent=15 // pred_fallthru
          _
        // Predicated region
        $region37: #{tpu_custom_call.1} parent=15 // pred_check
          %p506 = pneg %p201
        $region38: #{tpu_custom_call.1} parent=15 // pred_check_branch
          %508 = sbr.rel (%p506) target = $region40
        $region39: #{tpu_custom_call.1} parent=15 // pred_region
          %s509 = sand.u32 %s39, 1
          %s510 = scalar_lea.sflag [#allocation13], %s509
          %s511 = sand.u32 %s191, 1
          %s512 = smul.addr %s511, 2
          %s513 = scalar_lea.vmem [#allocation12], %s512
          %s515 = ssub.s32 32, 32
          %516 = vsyncadd %s510, %s515
          %s517 = smul.addr %s47, 2
          %s518 = smul.addr %s517, 16
          %s519 = scalar_lea.hbm %s5, %s518
          %s521 = sshll.u32 %s513, 4
          %s522 = int_to_ptr.vmem [resolvable:$true] %s521
          %524 = dma.hbm_to_vmem [thread:$0]  %s519, 32, %s522, %s510
        $region40: #{tpu_custom_call.1} parent=15 // pred_fallthru
          _
        // Predicated region
        $region41: #{tpu_custom_call.1} parent=15 // pred_check
          %p525 = pneg %p227
        $region42: #{tpu_custom_call.1} parent=15 // pred_check_branch
          %527 = sbr.rel (%p525) target = $region44
        $region43: #{tpu_custom_call.1} parent=15 // pred_region
          %s528 = sand.u32 %s39, 1
          %s529 = scalar_lea.sflag [#allocation13], %s528
          %s530 = sand.u32 %s217, 1
          %s531 = smul.addr %s530, 64
          %s532 = scalar_lea.vmem [#allocation14], %s531
          %s534 = ssub.s32 1024, 1024
          %535 = vsyncadd %s529, %s534
          %s536 = smul.addr %s47, 16
          %s537 = smul.addr %s536, 64
          %s538 = scalar_lea.hbm %s6, %s537
          %s539 = sshll.u32 %s532, 4
          %s540 = int_to_ptr.vmem [resolvable:$true] %s539
          %545 = dma.hbm_to_vmem [thread:$0]  %s538, 1024, %s540, %s529, 64, 64, 4
        $region44: #{tpu_custom_call.1} parent=15 // pred_fallthru
          _
        // Predicated region
        $region45: #{tpu_custom_call.1} parent=15 // pred_check
          %p546 = pneg %p253
        $region46: #{tpu_custom_call.1} parent=15 // pred_check_branch
          %548 = sbr.rel (%p546) target = $region48
        $region47: #{tpu_custom_call.1} parent=15 // pred_region
          %s549 = sand.u32 %s39, 1
          %s550 = scalar_lea.sflag [#allocation16], %s549
          %s551 = sand.u32 %s243, 1
          %s552 = scalar_lea.vmem [#allocation15], %s551
          %s554 = ssub.s32 16, 16
          %555 = vsyncadd %s550, %s554
          %s556 = smul.addr %s47, 16
          %s557 = scalar_lea.hbm %s7, %s556
          %s559 = sshll.u32 %s552, 4
          %s560 = int_to_ptr.vmem [resolvable:$true] %s559
          %562 = dma.hbm_to_vmem [thread:$0]  %s557, 16, %s560, %s550
        $region48: #{tpu_custom_call.1} parent=15 // pred_fallthru
          _
        // Predicated region
        $region49: #{tpu_custom_call.1} parent=15 // pred_check
          %p563 = pneg %p279
        $region50: #{tpu_custom_call.1} parent=15 // pred_check_branch
          %565 = sbr.rel (%p563) target = $region52
        $region51: #{tpu_custom_call.1} parent=15 // pred_region
          %s566 = sand.u32 %s39, 1
          %s567 = scalar_lea.sflag [#allocation16], %s566
          %s568 = sand.u32 %s269, 1
          %s569 = smul.addr %s568, 256
          %s570 = scalar_lea.vmem [#allocation17], %s569
          %s572 = ssub.s32 4096, 4096
          %573 = vsyncadd %s567, %s572
          %s574 = smul.addr %s47, 64
          %s575 = smul.addr %s574, 64
          %s576 = scalar_lea.hbm %s8, %s575
          %s577 = sshll.u32 %s570, 4
          %s578 = int_to_ptr.vmem [resolvable:$true] %s577
          %583 = dma.hbm_to_vmem [thread:$0]  %s576, 4096, %s578, %s567, 256, 256, 16
        $region52: #{tpu_custom_call.1} parent=15 // pred_fallthru
          _
        // Predicated region
        $region53: #{tpu_custom_call.1} parent=15 // pred_check
          %p584 = pneg %p305
        $region54: #{tpu_custom_call.1} parent=15 // pred_check_branch
          %586 = sbr.rel (%p584) target = $region56
        $region55: #{tpu_custom_call.1} parent=15 // pred_region
          %p587 = scmp.lt.s32.totalorder %s47, 3
          %s588 = scalar_select %p587, %s47, 3
          %s589 = smul.addr %s588, 4
          %s590 = scalar_lea.vmem %s9, %s589
        $region56: #{tpu_custom_call.1} parent=15 // pred_fallthru
          _
        // Predicated region
        $region57: #{tpu_custom_call.1} parent=15 // pred_check
          %p591 = pneg %p331
        $region58: #{tpu_custom_call.1} parent=15 // pred_check_branch
          %593 = sbr.rel (%p591) target = $region60
        $region59: #{tpu_custom_call.1} parent=15 // pred_region
          %s594 = sand.u32 %s321, 1
          %s595 = scalar_lea.sflag [#allocation19], %s594
          %s596 = sand.u32 %s321, 1
          %s597 = smul.addr %s596, 256
          %s598 = scalar_lea.vmem [#allocation18], %s597
          %s600 = ssub.s32 4096, 4096
          %601 = vsyncadd %s595, %s600
          %s602 = smul.addr %s47, 64
          %s603 = smul.addr %s602, 64
          %s604 = scalar_lea.hbm %s10, %s603
          %s605 = sshll.u32 %s598, 4
          %s606 = int_to_ptr.vmem [resolvable:$true] %s605
          %611 = dma.hbm_to_vmem [thread:$0]  %s604, 4096, %s606, %s595, 64, 64, 4
        $region60: #{tpu_custom_call.1} parent=15 // pred_fallthru
          _
        // Predicated region
        $region61: #{tpu_custom_call.1} parent=15 // pred_check
          %p612 = pneg %p357
        $region62: #{tpu_custom_call.1} parent=15 // pred_check_branch
          %614 = sbr.rel (%p612) target = $region64
        $region63: #{tpu_custom_call.1} parent=15 // pred_region
          %p615 = scmp.lt.s32.totalorder %s47, 3
          %s616 = scalar_select %p615, %s47, 3
          %s617 = scalar_lea.vmem %s11, %s616
        $region64: #{tpu_custom_call.1} parent=15 // pred_fallthru
          _
      $region16: #{tpu_custom_call.1} parent=5 // pred_fallthru
        _
      %p618 = scmp.le.s32.totalorder 1, %s39
      %p619 = scmp.lt.s32.totalorder %s39, 9
      %p620 = pnand %p618, %p619
      %p621 = pneg %p620
      // Predicated region
      $region65: #{tpu_custom_call.1} parent=5 // pred_check
        _
      $region66: #{tpu_custom_call.1} parent=5 // pred_check_branch
        %623 = sbr.rel (%p620) target = $region68
      $region67: #{tpu_custom_call.1} parent=5 // pred_region
        %s624 = ssub.s32 %s39, 1
        %s625 = sand.u32 %s64, 1
        %s626 = scalar_lea.sflag [#allocation4], %s625
        %s627 = sand.u32 %s64, 1
        %s628 = smul.addr %s627, 8
        %s629 = scalar_lea.vmem [#allocation3], %s628
        // Predicated region
        $region69: #{tpu_custom_call.1} parent=67 // pred_check
          %p630 = pneg %p77
        $region70: #{tpu_custom_call.1} parent=67 // pred_check_branch
          %632 = sbr.rel (%p630) target = $region72
        $region71: #{tpu_custom_call.1} parent=67 // pred_region
          %633 = dma.done %s626, 128
        $region72: #{tpu_custom_call.1} parent=67 // pred_fallthru
          _
        %s634 = sand.u32 %s44, 1
        %s635 = scalar_lea.sflag [#allocation7], %s634
        %s636 = sand.u32 %s90, 1
        %s637 = smul.addr %s636, 16
        %s638 = scalar_lea.vmem [#allocation6], %s637
        // Predicated region
        $region73: #{tpu_custom_call.1} parent=67 // pred_check
          %p639 = pneg %p103
        $region74: #{tpu_custom_call.1} parent=67 // pred_check_branch
          %641 = sbr.rel (%p639) target = $region76
        $region75: #{tpu_custom_call.1} parent=67 // pred_region
          %642 = dma.done %s635, 256
        $region76: #{tpu_custom_call.1} parent=67 // pred_fallthru
          _
        %s643 = sand.u32 %s44, 1
        %s644 = scalar_lea.sflag [#allocation7], %s643
        %s645 = sand.u32 %s116, 1
        %s646 = smul.addr %s645, 64
        %s647 = scalar_lea.vmem [#allocation8], %s646
        // Predicated region
        $region77: #{tpu_custom_call.1} parent=67 // pred_check
          %p648 = pneg %p129
        $region78: #{tpu_custom_call.1} parent=67 // pred_check_branch
          %650 = sbr.rel (%p648) target = $region80
        $region79: #{tpu_custom_call.1} parent=67 // pred_region
          %651 = dma.done %s644, 1024
        $region80: #{tpu_custom_call.1} parent=67 // pred_fallthru
          _
        %s652 = sand.u32 %s44, 1
        %s653 = scalar_lea.sflag [#allocation10], %s652
        %s654 = sand.u32 %s142, 1
        %s655 = scalar_lea.vmem [#allocation9], %s654
        // Predicated region
        $region81: #{tpu_custom_call.1} parent=67 // pred_check
          %p656 = pneg %p155
        $region82: #{tpu_custom_call.1} parent=67 // pred_check_branch
          %658 = sbr.rel (%p656) target = $region84
        $region83: #{tpu_custom_call.1} parent=67 // pred_region
          %659 = dma.done %s653, 16
        $region84: #{tpu_custom_call.1} parent=67 // pred_fallthru
          _
        %s660 = sand.u32 %s44, 1
        %s661 = scalar_lea.sflag [#allocation10], %s660
        %s662 = sand.u32 %s168, 1
        %s663 = smul.addr %s662, 128
        %s664 = scalar_lea.vmem [#allocation11], %s663
        // Predicated region
        $region85: #{tpu_custom_call.1} parent=67 // pred_check
          %p665 = pneg %p181
        $region86: #{tpu_custom_call.1} parent=67 // pred_check_branch
          %667 = sbr.rel (%p665) target = $region88
        $region87: #{tpu_custom_call.1} parent=67 // pred_region
          %668 = dma.done %s661, 2048
        $region88: #{tpu_custom_call.1} parent=67 // pred_fallthru
          _
        %s669 = sand.u32 %s44, 1
        %s670 = scalar_lea.sflag [#allocation13], %s669
        %s671 = sand.u32 %s194, 1
        %s672 = smul.addr %s671, 2
        %s673 = scalar_lea.vmem [#allocation12], %s672
        // Predicated region
        $region89: #{tpu_custom_call.1} parent=67 // pred_check
          %p674 = pneg %p207
        $region90: #{tpu_custom_call.1} parent=67 // pred_check_branch
          %676 = sbr.rel (%p674) target = $region92
        $region91: #{tpu_custom_call.1} parent=67 // pred_region
          %677 = dma.done %s670, 32
        $region92: #{tpu_custom_call.1} parent=67 // pred_fallthru
          _
        %s678 = sand.u32 %s44, 1
        %s679 = scalar_lea.sflag [#allocation13], %s678
        %s680 = sand.u32 %s220, 1
        %s681 = smul.addr %s680, 64
        %s682 = scalar_lea.vmem [#allocation14], %s681
        // Predicated region
        $region93: #{tpu_custom_call.1} parent=67 // pred_check
          %p683 = pneg %p233
        $region94: #{tpu_custom_call.1} parent=67 // pred_check_branch
          %685 = sbr.rel (%p683) target = $region96
        $region95: #{tpu_custom_call.1} parent=67 // pred_region
          %686 = dma.done %s679, 1024
        $region96: #{tpu_custom_call.1} parent=67 // pred_fallthru
          _
        %s687 = sand.u32 %s44, 1
        %s688 = scalar_lea.sflag [#allocation16], %s687
        %s689 = sand.u32 %s246, 1
        %s690 = scalar_lea.vmem [#allocation15], %s689
        // Predicated region
        $region97: #{tpu_custom_call.1} parent=67 // pred_check
          %p691 = pneg %p259
        $region98: #{tpu_custom_call.1} parent=67 // pred_check_branch
          %693 = sbr.rel (%p691) target = $region100
        $region99: #{tpu_custom_call.1} parent=67 // pred_region
          %694 = dma.done %s688, 16
        $region100: #{tpu_custom_call.1} parent=67 // pred_fallthru
          _
        %s695 = sand.u32 %s44, 1
        %s696 = scalar_lea.sflag [#allocation16], %s695
        %s697 = sand.u32 %s272, 1
        %s698 = smul.addr %s697, 256
        %s699 = scalar_lea.vmem [#allocation17], %s698
        // Predicated region
        $region101: #{tpu_custom_call.1} parent=67 // pred_check
          %p700 = pneg %p285
        $region102: #{tpu_custom_call.1} parent=67 // pred_check_branch
          %702 = sbr.rel (%p700) target = $region104
        $region103: #{tpu_custom_call.1} parent=67 // pred_region
          %703 = dma.done %s696, 4096
        $region104: #{tpu_custom_call.1} parent=67 // pred_fallthru
          _
        %s704 = sand.u32 %s324, 1
        %s705 = scalar_lea.sflag [#allocation19], %s704
        %s706 = sand.u32 %s324, 1
        %s707 = smul.addr %s706, 256
        %s708 = scalar_lea.vmem [#allocation18], %s707
        // Predicated region
        $region105: #{tpu_custom_call.1} parent=67 // pred_check
          %p709 = pneg %p337
        $region106: #{tpu_custom_call.1} parent=67 // pred_check_branch
          %711 = sbr.rel (%p709) target = $region108
        $region107: #{tpu_custom_call.1} parent=67 // pred_region
          %712 = dma.done %s705, 4096
        $region108: #{tpu_custom_call.1} parent=67 // pred_fallthru
          _
        %s713 = sand.u32 %s64, 1
        %s714 = scalar_lea.sflag [#allocation4], %s713
        %s715 = sand.u32 %s64, 1
        %s716 = smul.addr %s715, 8
        %s717 = scalar_lea.vmem [#allocation3], %s716
        %p718 = pneg %p77
        %p719 = pneg %p74
        %s720 = sand.u32 %s44, 1
        %s721 = scalar_lea.sflag [#allocation7], %s720
        %s722 = sand.u32 %s90, 1
        %s723 = smul.addr %s722, 16
        %s724 = scalar_lea.vmem [#allocation6], %s723
        %p725 = pneg %p103
        %p726 = pneg %p100
        %s727 = sand.u32 %s44, 1
        %s728 = scalar_lea.sflag [#allocation7], %s727
        %s729 = sand.u32 %s116, 1
        %s730 = smul.addr %s729, 64
        %s731 = scalar_lea.vmem [#allocation8], %s730
        %p732 = pneg %p129
        %p733 = pneg %p126
        %s734 = sand.u32 %s44, 1
        %s735 = scalar_lea.sflag [#allocation10], %s734
        %s736 = sand.u32 %s142, 1
        %s737 = scalar_lea.vmem [#allocation9], %s736
        %p738 = pneg %p155
        %p739 = pneg %p152
        %s740 = sand.u32 %s44, 1
        %s741 = scalar_lea.sflag [#allocation10], %s740
        %s742 = sand.u32 %s168, 1
        %s743 = smul.addr %s742, 128
        %s744 = scalar_lea.vmem [#allocation11], %s743
        %p745 = pneg %p181
        %p746 = pneg %p178
        %s747 = sand.u32 %s44, 1
        %s748 = scalar_lea.sflag [#allocation13], %s747
        %s749 = sand.u32 %s194, 1
        %s750 = smul.addr %s749, 2
        %s751 = scalar_lea.vmem [#allocation12], %s750
        %p752 = pneg %p207
        %p753 = pneg %p204
        %s754 = sand.u32 %s44, 1
        %s755 = scalar_lea.sflag [#allocation13], %s754
        %s756 = sand.u32 %s220, 1
        %s757 = smul.addr %s756, 64
        %s758 = scalar_lea.vmem [#allocation14], %s757
        %p759 = pneg %p233
        %p760 = pneg %p230
        %s761 = sand.u32 %s44, 1
        %s762 = scalar_lea.sflag [#allocation16], %s761
        %s763 = sand.u32 %s246, 1
        %s764 = scalar_lea.vmem [#allocation15], %s763
        %p765 = pneg %p259
        %p766 = pneg %p256
        %s767 = sand.u32 %s44, 1
        %s768 = scalar_lea.sflag [#allocation16], %s767
        %s769 = sand.u32 %s272, 1
        %s770 = smul.addr %s769, 256
        %s771 = scalar_lea.vmem [#allocation17], %s770
        %p772 = pneg %p285
        %p773 = pneg %p282
        %p774 = scmp.lt.s32.totalorder %s49, 3
        %s775 = scalar_select %p774, %s49, 3
        %s776 = smul.addr %s775, 4
        %s777 = scalar_lea.vmem %s9, %s776
        %p778 = pneg %p311
        %p779 = pneg %p308
        %s780 = sand.u32 %s324, 1
        %s781 = scalar_lea.sflag [#allocation19], %s780
        %s782 = sand.u32 %s324, 1
        %s783 = smul.addr %s782, 256
        %s784 = scalar_lea.vmem [#allocation18], %s783
        %p785 = pneg %p337
        %p786 = pneg %p334
        %p787 = scmp.lt.s32.totalorder %s49, 3
        %s788 = scalar_select %p787, %s49, 3
        %s789 = scalar_lea.vmem %s11, %s788
        %p790 = pneg %p363
        %p791 = pneg %p360
        %p792 = pneg %p389
        %p793 = pneg %p386
        %s794 = sand.u32 %s376, 1
        %s795 = scalar_lea.sflag [#allocation5], %s794
        %s796 = sand.u32 %s376, 1
        %s797 = smul.addr %s796, 8
        %s798 = scalar_lea.vmem [#allocation20], %s797
        %p799 = scmp.lt.s32.totalorder %s49, 3
        %s800 = scalar_select %p799, %s49, 3
        %s801 = smul.addr %s800, 4
        %s802 = scalar_lea.vmem %s9, %s801
        %p803 = scmp.lt.s32.totalorder %s49, 3
        %s804 = scalar_select %p803, %s49, 3
        %s805 = scalar_lea.vmem %s11, %s804
        %p807 = scmp.eq.s32.totalorder %s49, 0
        // Predicated region
        $region109: #{tpu_custom_call.1} parent=67 // pred_check
          %p808 = pneg %p807
        $region110: #{tpu_custom_call.1} parent=67 // pred_check_branch
          %810 = sbr.rel (%p808) target = $region112
        $region111: #{tpu_custom_call.1} parent=67 // pred_region
          %v811 = vld [vmem:[%s629] sm:$0xff]
          %812 = vst [vmem:[#allocation2] sm:$0xff] %v811
        $region112: #{tpu_custom_call.1} parent=67 // pred_fallthru
          _
        %v813 = vld [vmem:[#allocation2] sm:$0xff]
        %814 = vadd.xlane.f32.xlu0 %v813
        %v815 = vpop.xlane.xlu0 %814
        %v816 = vrcp.pop 128.0
        %v817 = vmul.f32 %v815, %v816
        %v818 = vsub.f32 %v813, %v817
        %v819 = vmul.f32 %v818, %v818
        %820 = vadd.xlane.f32.xlu0 %v819
        %v821 = vpop.xlane.xlu0 %820
        %v822 = vmul.f32 %v821, %v816
        %v823 = vadd.f32 %v822, 1e-05
        %v824 = vrsqrt.pop %v823
        %v825 = vmul.f32 %v818, %v824
        %v826 = vpack.c.bf16 %v825, %v825
        %p827 = scmp.lt.s32.totalorder %s49, 0
        %s828 = ssub.s32 0, %s49
        %s829 = scalar_select %p827, %s828, %s49
        %s830 = sand.u32 %s829, 1
        %s831 = ssub.s32 0, %s830
        %s832 = scalar_select %p827, %s831, %s830
        %p833 = scmp.ne.s32.totalorder %s832, 0
        %p834 = scmp.lt.s32.totalorder %s832, 0
        %p835 = pnand %p834, %p833
        %p836 = pneg %p835
        %s837 = sadd.s32 %s832, 2
        %s838 = scalar_select %p836, %s837, %s832
        %p839 = scmp.eq.s32.totalorder %s838, 1
        %v840 = vld [vmem:[%s638] sm:$0xff]
        %v841 = vld [vmem:[%s638 + $0x8] sm:$0xff]
        %s842 = scalar_select %p839, 1, 0
        %v843 = vstv %s842
        %vm844 = vcmp.eq.s32.totalorder %v843, 1
        %v845 = vsel %vm844, %v825, %v840
        %v846 = vsel %vm844, 0.0, %v841
        %s847 = scalar_select %p839, 8, 16
        %v848 = vld [vmem:[%s647] sm:$0xf]
        %v849 = vld [vmem:[%s647 + $0x4] sm:$0xf]
        %v850 = vld [vmem:[%s647 + $0x8] sm:$0xf]
        %v851 = vld [vmem:[%s647 + $0xc] sm:$0xf]
        %v852 = vld [vmem:[%s647 + $0x10] sm:$0xf]
        %v853 = vld [vmem:[%s647 + $0x14] sm:$0xf]
        %v854 = vld [vmem:[%s647 + $0x18] sm:$0xf]
        %v855 = vld [vmem:[%s647 + $0x1c] sm:$0xf]
        %v856 = vld [vmem:[%s647 + $0x20] sm:$0xf]
        %v857 = vld [vmem:[%s647 + $0x24] sm:$0xf]
        %v858 = vld [vmem:[%s647 + $0x28] sm:$0xf]
        %v859 = vld [vmem:[%s647 + $0x2c] sm:$0xf]
        %v860 = vld [vmem:[%s647 + $0x30] sm:$0xf]
        %v861 = vld [vmem:[%s647 + $0x34] sm:$0xf]
        %v862 = vld [vmem:[%s647 + $0x38] sm:$0xf]
        %v863 = vld [vmem:[%s647 + $0x3c] sm:$0xf]
        %v864 = vld [vmem:[%s655] sm:$0x1]
        %v866 = vlaneseq
        %v867 = vshrl.u32 %v866, 7
        %v868 = vsub.s32 0, %v867
        %v869 = vrot.slane %v864, %v868
        %v887 = vunpack.c.l.b16 %v848
        %v888 = vunpack.c.l.b16 %v849
        %v889 = vunpack.c.l.b16 %v850
        %v890 = vunpack.c.l.b16 %v851
        %v891 = vunpack.c.l.b16 %v852
        %v892 = vunpack.c.l.b16 %v853
        %v893 = vunpack.c.l.b16 %v854
        %v894 = vunpack.c.l.b16 %v855
        %v895 = vunpack.c.l.b16 %v856
        %v896 = vunpack.c.l.b16 %v857
        %v897 = vunpack.c.l.b16 %v858
        %v898 = vunpack.c.l.b16 %v859
        %v899 = vunpack.c.l.b16 %v860
        %v900 = vunpack.c.l.b16 %v861
        %v901 = vunpack.c.l.b16 %v862
        %v902 = vunpack.c.l.b16 %v863
        %v903 = vpack.c.b16 %v888, %v887
        %v904 = vpack.c.b16 %v890, %v889
        %v905 = vpack.c.b16 %v892, %v891
        %v906 = vpack.c.b16 %v894, %v893
        %v907 = vpack.c.b16 %v896, %v895
        %v908 = vpack.c.b16 %v898, %v897
        %v909 = vpack.c.b16 %v900, %v899
        %v910 = vpack.c.b16 %v902, %v901
        %919 = vmatprep.subr.bf16.mxu0 0
        %920 = vmatpush1.bf16.msra.mxu0 %v910
        %921 = vmatprep.subr.bf16.mxu0 0
        %922 = vmatpush1.bf16.msra.mxu0 %v909
        %923 = vmatprep.subr.bf16.mxu0 0
        %924 = vmatpush1.bf16.msra.mxu0 %v908
        %925 = vmatprep.subr.bf16.mxu0 0
        %926 = vmatpush1.bf16.msra.mxu0 %v907
        %927 = vmatprep.subr.bf16.mxu0 0
        %928 = vmatpush1.bf16.msra.mxu0 %v906
        %929 = vmatprep.subr.bf16.mxu0 0
        %930 = vmatpush1.bf16.msra.mxu0 %v905
        %931 = vmatprep.subr.bf16.mxu0 0
        %932 = vmatpush1.bf16.msra.mxu0 %v904
        %933 = vmatprep.subr.bf16.mxu0 0
        %934 = vmatpush1.bf16.msra.mxu0 %v903
        %935 = vmatprep.subr.bf16.mxu0 0
        %936 = vmatpush2.bf16.msra.mxu0 0
        %937 = vmatprep.subr.bf16.mxu0 0
        %938 = vmatpush2.bf16.msra.mxu0 0
        %939 = vmatprep.subr.bf16.mxu0 0
        %940 = vmatpush2.bf16.msra.mxu0 0
        %941 = vmatprep.subr.bf16.mxu0 0
        %942 = vmatpush2.bf16.msra.mxu0 0
        %943 = vmatprep.subr.bf16.mxu0 0
        %944 = vmatpush2.bf16.msra.mxu0 0
        %945 = vmatprep.subr.bf16.mxu0 0
        %946 = vmatpush2.bf16.msra.mxu0 0
        %947 = vmatprep.subr.bf16.mxu0 0
        %948 = vmatpush2.bf16.msra.mxu0 0
        %949 = vmatprep.subr.bf16.mxu0 0
        %950 = vmatpush2.bf16.msra.mxu0 0
        %951 = vmatprep.mubr.bf16.mxu0 0
        %952 = vmatmul.mubr.bf16.gmra.mxu0 %v826
        %v953 = vpop.f32.mrf.mxu0
        %v954 = vadd.f32 %v869, %v953
        %v955 = vpop.f32.mrf.mxu0
        %v956 = vpop.f32.mrf.mxu0
        %v957 = vpop.f32.mrf.mxu0
        %958 = vdwg.mxu0
        %v959 = vpack.c.bf16 %v846, %v845
        %v960 = vld [vmem:[%s664] sm:$0xff]
        %v961 = vld [vmem:[%s664 + $0x8] sm:$0xff]
        %v962 = vld [vmem:[%s664 + $0x10] sm:$0xff]
        %v963 = vld [vmem:[%s664 + $0x18] sm:$0xff]
        %v964 = vld [vmem:[%s664 + $0x20] sm:$0xff]
        %v965 = vld [vmem:[%s664 + $0x28] sm:$0xff]
        %v966 = vld [vmem:[%s664 + $0x30] sm:$0xff]
        %v967 = vld [vmem:[%s664 + $0x38] sm:$0xff]
        %v968 = vld [vmem:[%s664 + $0x40] sm:$0xff]
        %v969 = vld [vmem:[%s664 + $0x48] sm:$0xff]
        %v970 = vld [vmem:[%s664 + $0x50] sm:$0xff]
        %v971 = vld [vmem:[%s664 + $0x58] sm:$0xff]
        %v972 = vld [vmem:[%s664 + $0x60] sm:$0xff]
        %v973 = vld [vmem:[%s664 + $0x68] sm:$0xff]
        %v974 = vld [vmem:[%s664 + $0x70] sm:$0xff]
        %v975 = vld [vmem:[%s664 + $0x78] sm:$0xff]
        %v976 = vld [vmem:[%s673] sm:$0x3]
        %v978 = vlaneseq
        %v979 = vshrl.u32 %v978, 7
        %v980 = vsub.s32 0, %v979
        %v981 = vrot.slane %v976, %v980
        %v982 = vlaneseq
        %v983 = vshrl.u32 %v982, 7
        %v984 = vsub.s32 1, %v983
        %v985 = vrot.slane %v976, %v984
        %v1004 = vunpack.c.l.b16 %v960
        %v1005 = vunpack.c.h.b16 %v960
        %v1006 = vunpack.c.l.b16 %v961
        %v1007 = vunpack.c.h.b16 %v961
        %v1008 = vunpack.c.l.b16 %v962
        %v1009 = vunpack.c.h.b16 %v962
        %v1010 = vunpack.c.l.b16 %v963
        %v1011 = vunpack.c.h.b16 %v963
        %v1012 = vunpack.c.l.b16 %v964
        %v1013 = vunpack.c.h.b16 %v964
        %v1014 = vunpack.c.l.b16 %v965
        %v1015 = vunpack.c.h.b16 %v965
        %v1016 = vunpack.c.l.b16 %v966
        %v1017 = vunpack.c.h.b16 %v966
        %v1018 = vunpack.c.l.b16 %v967
        %v1019 = vunpack.c.h.b16 %v967
        %v1020 = vunpack.c.l.b16 %v968
        %v1021 = vunpack.c.h.b16 %v968
        %v1022 = vunpack.c.l.b16 %v969
        %v1023 = vunpack.c.h.b16 %v969
        %v1024 = vunpack.c.l.b16 %v970
        %v1025 = vunpack.c.h.b16 %v970
        %v1026 = vunpack.c.l.b16 %v971
        %v1027 = vunpack.c.h.b16 %v971
        %v1028 = vunpack.c.l.b16 %v972
        %v1029 = vunpack.c.h.b16 %v972
        %v1030 = vunpack.c.l.b16 %v973
        %v1031 = vunpack.c.h.b16 %v973
        %v1032 = vunpack.c.l.b16 %v974
        %v1033 = vunpack.c.h.b16 %v974
        %v1034 = vunpack.c.l.b16 %v975
        %v1035 = vunpack.c.h.b16 %v975
        %v1036 = vpack.c.b16 %v1006, %v1004
        %v1037 = vpack.c.b16 %v1007, %v1005
        %v1038 = vpack.c.b16 %v1010, %v1008
        %v1039 = vpack.c.b16 %v1011, %v1009
        %v1040 = vpack.c.b16 %v1014, %v1012
        %v1041 = vpack.c.b16 %v1015, %v1013
        %v1042 = vpack.c.b16 %v1018, %v1016
        %v1043 = vpack.c.b16 %v1019, %v1017
        %v1044 = vpack.c.b16 %v1022, %v1020
        %v1045 = vpack.c.b16 %v1023, %v1021
        %v1046 = vpack.c.b16 %v1026, %v1024
        %v1047 = vpack.c.b16 %v1027, %v1025
        %v1048 = vpack.c.b16 %v1030, %v1028
        %v1049 = vpack.c.b16 %v1031, %v1029
        %v1050 = vpack.c.b16 %v1034, %v1032
        %v1051 = vpack.c.b16 %v1035, %v1033
        %1068 = vmatprep.subr.bf16.mxu0 %v1051
        %1069 = vmatpush1.bf16.msra.mxu0 %v1050
        %1070 = vmatprep.subr.bf16.mxu0 %v1049
        %1071 = vmatpush1.bf16.msra.mxu0 %v1048
        %1072 = vmatprep.subr.bf16.mxu0 %v1047
        %1073 = vmatpush1.bf16.msra.mxu0 %v1046
        %1074 = vmatprep.subr.bf16.mxu0 %v1045
        %1075 = vmatpush1.bf16.msra.mxu0 %v1044
        %1076 = vmatprep.subr.bf16.mxu0 %v1043
        %1077 = vmatpush1.bf16.msra.mxu0 %v1042
        %1078 = vmatprep.subr.bf16.mxu0 %v1041
        %1079 = vmatpush1.bf16.msra.mxu0 %v1040
        %1080 = vmatprep.subr.bf16.mxu0 %v1039
        %1081 = vmatpush1.bf16.msra.mxu0 %v1038
        %1082 = vmatprep.subr.bf16.mxu0 %v1037
        %1083 = vmatpush1.bf16.msra.mxu0 %v1036
        %1084 = vmatprep.subr.bf16.mxu0 0
        %1085 = vmatpush2.bf16.msra.mxu0 0
        %1086 = vmatprep.subr.bf16.mxu0 0
        %1087 = vmatpush2.bf16.msra.mxu0 0
        %1088 = vmatprep.subr.bf16.mxu0 0
        %1089 = vmatpush2.bf16.msra.mxu0 0
        %1090 = vmatprep.subr.bf16.mxu0 0
        %1091 = vmatpush2.bf16.msra.mxu0 0
        %1092 = vmatprep.subr.bf16.mxu0 0
        %1093 = vmatpush2.bf16.msra.mxu0 0
        %1094 = vmatprep.subr.bf16.mxu0 0
        %1095 = vmatpush2.bf16.msra.mxu0 0
        %1096 = vmatprep.subr.bf16.mxu0 0
        %1097 = vmatpush2.bf16.msra.mxu0 0
        %1098 = vmatprep.subr.bf16.mxu0 0
        %1099 = vmatpush2.bf16.msra.mxu0 0
        %1100 = vmatprep.mubr.bf16.mxu0 0
        %1101 = vmatmul.mubr.bf16.gmra.mxu0 %v959
        %v1102 = vpop.f32.mrf.mxu0
        %v1103 = vadd.f32 %v981, %v1102
        %v1104 = vpop.f32.mrf.mxu0
        %v1105 = vadd.f32 %v985, %v1104
        %v1106 = vpop.f32.mrf.mxu0
        %v1107 = vadd.f32 %v981, %v1106
        %v1108 = vpop.f32.mrf.mxu0
        %v1109 = vadd.f32 %v985, %v1108
        %1110 = vdwg.mxu0
        %v1111 = vlaneseq
        %v1112 = vand.u32 %v1111, 127
        %v1113 = vstv %s847
        %vm1114 = vcmp.lt.s32.totalorder %v1112, %v1113
        %v1115 = vld [vmem:[%s682] sm:$0xf]
        %v1116 = vld [vmem:[%s682 + $0x4] sm:$0xf]
        %v1117 = vld [vmem:[%s682 + $0x8] sm:$0xf]
        %v1118 = vld [vmem:[%s682 + $0xc] sm:$0xf]
        %v1119 = vld [vmem:[%s682 + $0x10] sm:$0xf]
        %v1120 = vld [vmem:[%s682 + $0x14] sm:$0xf]
        %v1121 = vld [vmem:[%s682 + $0x18] sm:$0xf]
        %v1122 = vld [vmem:[%s682 + $0x1c] sm:$0xf]
        %v1123 = vld [vmem:[%s682 + $0x20] sm:$0xf]
        %v1124 = vld [vmem:[%s682 + $0x24] sm:$0xf]
        %v1125 = vld [vmem:[%s682 + $0x28] sm:$0xf]
        %v1126 = vld [vmem:[%s682 + $0x2c] sm:$0xf]
        %v1127 = vld [vmem:[%s682 + $0x30] sm:$0xf]
        %v1128 = vld [vmem:[%s682 + $0x34] sm:$0xf]
        %v1129 = vld [vmem:[%s682 + $0x38] sm:$0xf]
        %v1130 = vld [vmem:[%s682 + $0x3c] sm:$0xf]
        %v1131 = vld [vmem:[%s690] sm:$0x1]
        %v1133 = vlaneseq
        %v1134 = vshrl.u32 %v1133, 7
        %v1135 = vsub.s32 0, %v1134
        %v1136 = vrot.slane %v1131, %v1135
        %v1138 = vadd.f32 %v1136, 0.0
        %vm1139 = vcmask 523264
        %v1141 = vsel %vm1139, %v954, 0
        %v1144 = vsel %vm1139, %v1103, 0
        %v1147 = vsel %vm1139, %v1107, 0
        %1149 = vmatprep.subr.mxu0 0.0
        %1150 = vmatpush1.xpose.msra.mxu0 0.0
        %1151 = vmatprep.subr.mxu0 0.0
        %1152 = vmatpush1.xpose.msra.mxu0 0.0
        %1153 = vmatprep.subr.mxu0 0.0
        %1154 = vmatpush1.xpose.msra.mxu0 0.0
        %1155 = vmatprep.subr.mxu0 0.0
        %1156 = vmatpush1.xpose.msra.mxu0 0.0
        %1157 = vmatprep.subr.mxu0 0.0
        %1158 = vmatpush1.xpose.msra.mxu0 0.0
        %1159 = vmatprep.subr.mxu0 0.0
        %1160 = vmatpush1.xpose.msra.mxu0 0.0
        %1161 = vmatprep.subr.mxu0 0.0
        %1162 = vmatpush1.xpose.msra.mxu0 0.0
        %1163 = vmatprep.subr.mxu0 0.0
        %1164 = vmatpush1.xpose.msra.mxu0 0.0
        %1165 = vmatprep.subr.mxu0 0.0
        %1166 = vmatpush1.xpose.msra.mxu0 0.0
        %1167 = vmatprep.subr.mxu0 0.0
        %1168 = vmatpush1.xpose.msra.mxu0 0.0
        %1169 = vmatprep.subr.mxu0 0.0
        %1170 = vmatpush1.xpose.msra.mxu0 0.0
        %1171 = vmatprep.subr.mxu0 0.0
        %1172 = vmatpush1.xpose.msra.mxu0 0.0
        %1173 = vmatprep.subr.mxu0 0.0
        %1174 = vmatpush1.xpose.msra.mxu0 0.0
        %1175 = vmatprep.subr.mxu0 0.0
        %1176 = vmatpush1.xpose.msra.mxu0 0.0
        %1177 = vmatprep.subr.mxu0 0.0
        %1178 = vmatpush1.xpose.msra.mxu0 %v1147
        %1179 = vmatprep.subr.mxu0 0.0
        %1180 = vmatpush1.xpose.msra.mxu0 %v1144
        %1181 = vmatprep.subr.mxu0 0.0
        %1182 = vmatpush2.xpose.msra.mxu0 0.0
        %1183 = vmatprep.subr.mxu0 0.0
        %1184 = vmatpush2.xpose.msra.mxu0 0.0
        %1185 = vmatprep.subr.mxu0 0.0
        %1186 = vmatpush2.xpose.msra.mxu0 0.0
        %1187 = vmatprep.subr.mxu0 0.0
        %1188 = vmatpush2.xpose.msra.mxu0 0.0
        %1189 = vmatprep.subr.mxu0 0.0
        %1190 = vmatpush2.xpose.msra.mxu0 0.0
        %1191 = vmatprep.subr.mxu0 0.0
        %1192 = vmatpush2.xpose.msra.mxu0 0.0
        %1193 = vmatprep.subr.mxu0 0.0
        %1194 = vmatpush2.xpose.msra.mxu0 0.0
        %1195 = vmatprep.subr.mxu0 0.0
        %1196 = vmatpush2.xpose.msra.mxu0 0.0
        %1197 = vmatprep.subr.mxu0 0.0
        %1198 = vmatpush2.xpose.msra.mxu0 0.0
        %1199 = vmatprep.subr.mxu0 0.0
        %1200 = vmatpush2.xpose.msra.mxu0 0.0
        %1201 = vmatprep.subr.mxu0 0.0
        %1202 = vmatpush2.xpose.msra.mxu0 0.0
        %1203 = vmatprep.subr.mxu0 0.0
        %1204 = vmatpush2.xpose.msra.mxu0 0.0
        %1205 = vmatprep.subr.mxu0 0.0
        %1206 = vmatpush2.xpose.msra.mxu0 0.0
        %1207 = vmatprep.subr.mxu0 0.0
        %1208 = vmatpush2.xpose.msra.mxu0 0.0
        %1209 = vmatprep.subr.mxu0 0.0
        %1210 = vmatpush2.xpose.msra.mxu0 0.0
        %1211 = vmatprep.subr.mxu0 0.0
        %1212 = vmatpush2.xpose.msra.mxu0 0.0
        %1213 = vmatprep.mubr.f32.mxu0 0.0
        %1214 = vmatmul.mubr.f32.gmra.mxu0 %v1141
        %v1215 = vpop.f32.mrf.mxu0
        %v1216 = vadd.f32 0.0, %v1215
        %v1217 = vpop.f32.mrf.mxu0
        %1218 = vdwg.mxu0
        %v1219 = vmul.f32 %v1216, 0.125
        %v1220 = vsel %vm1114, %v1219, -inf
        %vm1221 = vcmask 130048
        %v1222 = vsel %vm1221, %v1220, -inf
        %1223 = vmax.xlane.f32.xlu0 %v1222
        %v1224 = vpop.xlane.xlu0 %1223
        %v1225 = vsub.f32 %v1220, %v1224
        %v1226 = vmul.f32 %v1225, 1.442695
        %v1227 = vpow.pop %v1226
        %v1228 = vsel %vm1221, %v1227, 0.0
        %1229 = vadd.xlane.f32.xlu0 %v1228
        %v1230 = vpop.xlane.xlu0 %1229
        %v1231 = vrcp.pop %v1230
        %v1232 = vmul.f32 %v1227, %v1231
        %v1234 = vsel %vm1221, %v1232, 0
        %1236 = vmatprep.subr.mxu0 0.0
        %1237 = vmatpush1.msra.mxu0 0.0
        %1238 = vmatprep.subr.mxu0 0.0
        %1239 = vmatpush1.msra.mxu0 0.0
        %1240 = vmatprep.subr.mxu0 0.0
        %1241 = vmatpush1.msra.mxu0 0.0
        %1242 = vmatprep.subr.mxu0 0.0
        %1243 = vmatpush1.msra.mxu0 0.0
        %1244 = vmatprep.subr.mxu0 0.0
        %1245 = vmatpush1.msra.mxu0 0.0
        %1246 = vmatprep.subr.mxu0 0.0
        %1247 = vmatpush1.msra.mxu0 0.0
        %1248 = vmatprep.subr.mxu0 0.0
        %1249 = vmatpush1.msra.mxu0 0.0
        %1250 = vmatprep.subr.mxu0 0.0
        %1251 = vmatpush1.msra.mxu0 0.0
        %1252 = vmatprep.subr.mxu0 0.0
        %1253 = vmatpush1.msra.mxu0 0.0
        %1254 = vmatprep.subr.mxu0 0.0
        %1255 = vmatpush1.msra.mxu0 0.0
        %1256 = vmatprep.subr.mxu0 0.0
        %1257 = vmatpush1.msra.mxu0 0.0
        %1258 = vmatprep.subr.mxu0 0.0
        %1259 = vmatpush1.msra.mxu0 0.0
        %1260 = vmatprep.subr.mxu0 0.0
        %1261 = vmatpush1.msra.mxu0 0.0
        %1262 = vmatprep.subr.mxu0 0.0
        %1263 = vmatpush1.msra.mxu0 0.0
        %1264 = vmatprep.subr.mxu0 0.0
        %1265 = vmatpush1.msra.mxu0 %v1109
        %1266 = vmatprep.subr.mxu0 0.0
        %1267 = vmatpush1.msra.mxu0 %v1105
        %1268 = vmatprep.subr.mxu0 0.0
        %1269 = vmatpush2.msra.mxu0 0.0
        %1270 = vmatprep.subr.mxu0 0.0
        %1271 = vmatpush2.msra.mxu0 0.0
        %1272 = vmatprep.subr.mxu0 0.0
        %1273 = vmatpush2.msra.mxu0 0.0
        %1274 = vmatprep.subr.mxu0 0.0
        %1275 = vmatpush2.msra.mxu0 0.0
        %1276 = vmatprep.subr.mxu0 0.0
        %1277 = vmatpush2.msra.mxu0 0.0
        %1278 = vmatprep.subr.mxu0 0.0
        %1279 = vmatpush2.msra.mxu0 0.0
        %1280 = vmatprep.subr.mxu0 0.0
        %1281 = vmatpush2.msra.mxu0 0.0
        %1282 = vmatprep.subr.mxu0 0.0
        %1283 = vmatpush2.msra.mxu0 0.0
        %1284 = vmatprep.subr.mxu0 0.0
        %1285 = vmatpush2.msra.mxu0 0.0
        %1286 = vmatprep.subr.mxu0 0.0
        %1287 = vmatpush2.msra.mxu0 0.0
        %1288 = vmatprep.subr.mxu0 0.0
        %1289 = vmatpush2.msra.mxu0 0.0
        %1290 = vmatprep.subr.mxu0 0.0
        %1291 = vmatpush2.msra.mxu0 0.0
        %1292 = vmatprep.subr.mxu0 0.0
        %1293 = vmatpush2.msra.mxu0 0.0
        %1294 = vmatprep.subr.mxu0 0.0
        %1295 = vmatpush2.msra.mxu0 0.0
        %1296 = vmatprep.subr.mxu0 0.0
        %1297 = vmatpush2.msra.mxu0 0.0
        %1298 = vmatprep.subr.mxu0 0.0
        %1299 = vmatpush2.msra.mxu0 0.0
        %1300 = vmatprep.mubr.f32.mxu0 0.0
        %1301 = vmatmul.mubr.f32.gmra.mxu0 %v1234
        %v1302 = vpop.f32.mrf.mxu0
        %v1303 = vadd.f32 0.0, %v1302
        %v1304 = vpop.f32.mrf.mxu0
        %1305 = vdwg.mxu0
        %v1306 = vpack.c.bf16 %v1303, %v1303
        %v1315 = vunpack.c.l.b16 %v1115
        %v1316 = vunpack.c.l.b16 %v1116
        %v1317 = vunpack.c.l.b16 %v1117
        %v1318 = vunpack.c.l.b16 %v1118
        %v1319 = vunpack.c.l.b16 %v1119
        %v1320 = vunpack.c.l.b16 %v1120
        %v1321 = vunpack.c.l.b16 %v1121
        %v1322 = vunpack.c.l.b16 %v1122
        %v1323 = vpack.c.b16 %v1316, %v1315
        %v1324 = vpack.c.b16 %v1318, %v1317
        %v1325 = vpack.c.b16 %v1320, %v1319
        %v1326 = vpack.c.b16 %v1322, %v1321
        %v1332 = vsel %vm1139, %v1306, 0
        %1334 = vmatprep.subr.bf16.mxu0 0
        %1335 = vmatpush1.bf16.msra.mxu0 0
        %1336 = vmatprep.subr.bf16.mxu0 0
        %1337 = vmatpush1.bf16.msra.mxu0 0
        %1338 = vmatprep.subr.bf16.mxu0 0
        %1339 = vmatpush1.bf16.msra.mxu0 0
        %1340 = vmatprep.subr.bf16.mxu0 0
        %1341 = vmatpush1.bf16.msra.mxu0 0
        %1342 = vmatprep.subr.bf16.mxu0 0
        %1343 = vmatpush1.bf16.msra.mxu0 %v1326
        %1344 = vmatprep.subr.bf16.mxu0 0
        %1345 = vmatpush1.bf16.msra.mxu0 %v1325
        %1346 = vmatprep.subr.bf16.mxu0 0
        %1347 = vmatpush1.bf16.msra.mxu0 %v1324
        %1348 = vmatprep.subr.bf16.mxu0 0
        %1349 = vmatpush1.bf16.msra.mxu0 %v1323
        %1350 = vmatprep.subr.bf16.mxu0 0
        %1351 = vmatpush2.bf16.msra.mxu0 0
        %1352 = vmatprep.subr.bf16.mxu0 0
        %1353 = vmatpush2.bf16.msra.mxu0 0
        %1354 = vmatprep.subr.bf16.mxu0 0
        %1355 = vmatpush2.bf16.msra.mxu0 0
        %1356 = vmatprep.subr.bf16.mxu0 0
        %1357 = vmatpush2.bf16.msra.mxu0 0
        %1358 = vmatprep.subr.bf16.mxu0 0
        %1359 = vmatpush2.bf16.msra.mxu0 0
        %1360 = vmatprep.subr.bf16.mxu0 0
        %1361 = vmatpush2.bf16.msra.mxu0 0
        %1362 = vmatprep.subr.bf16.mxu0 0
        %1363 = vmatpush2.bf16.msra.mxu0 0
        %1364 = vmatprep.subr.bf16.mxu0 0
        %1365 = vmatpush2.bf16.msra.mxu0 0
        %1366 = vmatprep.mubr.bf16.mxu0 0
        %1367 = vmatmul.mubr.bf16.gmra.mxu0 %v1332
        %v1368 = vpop.f32.mrf.mxu0
        %v1369 = vadd.f32 0.0, %v1368
        %v1370 = vpop.f32.mrf.mxu0
        %v1371 = vpop.f32.mrf.mxu0
        %v1372 = vpop.f32.mrf.mxu0
        %1373 = vdwg.mxu0
        %v1374 = vadd.f32 %v1138, %v1369
        %1375 = vrot.lane.b32.xlu0 %v954, 64
        %v1376 = vpop.permute.xlu0 %1375
        %1377 = vrot.lane.b32.xlu0 %v1103, 64
        %v1378 = vpop.permute.xlu0 %1377
        %1379 = vrot.lane.b32.xlu0 %v1107, 64
        %v1380 = vpop.permute.xlu0 %1379
        %v1381 = vsel %vm1139, %v1376, 0
        %v1383 = vsel %vm1139, %v1378, 0
        %v1385 = vsel %vm1139, %v1380, 0
        %1387 = vmatprep.subr.mxu0 0.0
        %1388 = vmatpush1.xpose.msra.mxu0 0.0
        %1389 = vmatprep.subr.mxu0 0.0
        %1390 = vmatpush1.xpose.msra.mxu0 0.0
        %1391 = vmatprep.subr.mxu0 0.0
        %1392 = vmatpush1.xpose.msra.mxu0 0.0
        %1393 = vmatprep.subr.mxu0 0.0
        %1394 = vmatpush1.xpose.msra.mxu0 0.0
        %1395 = vmatprep.subr.mxu0 0.0
        %1396 = vmatpush1.xpose.msra.mxu0 0.0
        %1397 = vmatprep.subr.mxu0 0.0
        %1398 = vmatpush1.xpose.msra.mxu0 0.0
        %1399 = vmatprep.subr.mxu0 0.0
        %1400 = vmatpush1.xpose.msra.mxu0 0.0
        %1401 = vmatprep.subr.mxu0 0.0
        %1402 = vmatpush1.xpose.msra.mxu0 0.0
        %1403 = vmatprep.subr.mxu0 0.0
        %1404 = vmatpush1.xpose.msra.mxu0 0.0
        %1405 = vmatprep.subr.mxu0 0.0
        %1406 = vmatpush1.xpose.msra.mxu0 0.0
        %1407 = vmatprep.subr.mxu0 0.0
        %1408 = vmatpush1.xpose.msra.mxu0 0.0
        %1409 = vmatprep.subr.mxu0 0.0
        %1410 = vmatpush1.xpose.msra.mxu0 0.0
        %1411 = vmatprep.subr.mxu0 0.0
        %1412 = vmatpush1.xpose.msra.mxu0 0.0
        %1413 = vmatprep.subr.mxu0 0.0
        %1414 = vmatpush1.xpose.msra.mxu0 0.0
        %1415 = vmatprep.subr.mxu0 0.0
        %1416 = vmatpush1.xpose.msra.mxu0 %v1385
        %1417 = vmatprep.subr.mxu0 0.0
        %1418 = vmatpush1.xpose.msra.mxu0 %v1383
        %1419 = vmatprep.subr.mxu0 0.0
        %1420 = vmatpush2.xpose.msra.mxu0 0.0
        %1421 = vmatprep.subr.mxu0 0.0
        %1422 = vmatpush2.xpose.msra.mxu0 0.0
        %1423 = vmatprep.subr.mxu0 0.0
        %1424 = vmatpush2.xpose.msra.mxu0 0.0
        %1425 = vmatprep.subr.mxu0 0.0
        %1426 = vmatpush2.xpose.msra.mxu0 0.0
        %1427 = vmatprep.subr.mxu0 0.0
        %1428 = vmatpush2.xpose.msra.mxu0 0.0
        %1429 = vmatprep.subr.mxu0 0.0
        %1430 = vmatpush2.xpose.msra.mxu0 0.0
        %1431 = vmatprep.subr.mxu0 0.0
        %1432 = vmatpush2.xpose.msra.mxu0 0.0
        %1433 = vmatprep.subr.mxu0 0.0
        %1434 = vmatpush2.xpose.msra.mxu0 0.0
        %1435 = vmatprep.subr.mxu0 0.0
        %1436 = vmatpush2.xpose.msra.mxu0 0.0
        %1437 = vmatprep.subr.mxu0 0.0
        %1438 = vmatpush2.xpose.msra.mxu0 0.0
        %1439 = vmatprep.subr.mxu0 0.0
        %1440 = vmatpush2.xpose.msra.mxu0 0.0
        %1441 = vmatprep.subr.mxu0 0.0
        %1442 = vmatpush2.xpose.msra.mxu0 0.0
        %1443 = vmatprep.subr.mxu0 0.0
        %1444 = vmatpush2.xpose.msra.mxu0 0.0
        %1445 = vmatprep.subr.mxu0 0.0
        %1446 = vmatpush2.xpose.msra.mxu0 0.0
        %1447 = vmatprep.subr.mxu0 0.0
        %1448 = vmatpush2.xpose.msra.mxu0 0.0
        %1449 = vmatprep.subr.mxu0 0.0
        %1450 = vmatpush2.xpose.msra.mxu0 0.0
        %1451 = vmatprep.mubr.f32.mxu0 0.0
        %1452 = vmatmul.mubr.f32.gmra.mxu0 %v1381
        %v1453 = vpop.f32.mrf.mxu0
        %v1454 = vadd.f32 0.0, %v1453
        %v1455 = vpop.f32.mrf.mxu0
        %1456 = vdwg.mxu0
        %v1457 = vmul.f32 %v1454, 0.125
        %v1458 = vsel %vm1114, %v1457, -inf
        %v1459 = vsel %vm1221, %v1458, -inf
        %1460 = vmax.xlane.f32.xlu0 %v1459
        %v1461 = vpop.xlane.xlu0 %1460
        %v1462 = vsub.f32 %v1458, %v1461
        %v1463 = vmul.f32 %v1462, 1.442695
        %v1464 = vpow.pop %v1463
        %v1465 = vsel %vm1221, %v1464, 0.0
        %1466 = vadd.xlane.f32.xlu0 %v1465
        %v1467 = vpop.xlane.xlu0 %1466
        %v1468 = vrcp.pop %v1467
        %v1469 = vmul.f32 %v1464, %v1468
        %1472 = vrot.lane.b32.xlu0 %v1105, 64
        %v1473 = vpop.permute.xlu0 %1472
        %1474 = vrot.lane.b32.xlu0 %v1109, 64
        %v1475 = vpop.permute.xlu0 %1474
        %v1479 = vsel %vm1221, %v1469, 0
        %1481 = vmatprep.subr.mxu0 0.0
        %1482 = vmatpush1.msra.mxu0 0.0
        %1483 = vmatprep.subr.mxu0 0.0
        %1484 = vmatpush1.msra.mxu0 0.0
        %1485 = vmatprep.subr.mxu0 0.0
        %1486 = vmatpush1.msra.mxu0 0.0
        %1487 = vmatprep.subr.mxu0 0.0
        %1488 = vmatpush1.msra.mxu0 0.0
        %1489 = vmatprep.subr.mxu0 0.0
        %1490 = vmatpush1.msra.mxu0 0.0
        %1491 = vmatprep.subr.mxu0 0.0
        %1492 = vmatpush1.msra.mxu0 0.0
        %1493 = vmatprep.subr.mxu0 0.0
        %1494 = vmatpush1.msra.mxu0 0.0
        %1495 = vmatprep.subr.mxu0 0.0
        %1496 = vmatpush1.msra.mxu0 0.0
        %1497 = vmatprep.subr.mxu0 0.0
        %1498 = vmatpush1.msra.mxu0 0.0
        %1499 = vmatprep.subr.mxu0 0.0
        %1500 = vmatpush1.msra.mxu0 0.0
        %1501 = vmatprep.subr.mxu0 0.0
        %1502 = vmatpush1.msra.mxu0 0.0
        %1503 = vmatprep.subr.mxu0 0.0
        %1504 = vmatpush1.msra.mxu0 0.0
        %1505 = vmatprep.subr.mxu0 0.0
        %1506 = vmatpush1.msra.mxu0 0.0
        %1507 = vmatprep.subr.mxu0 0.0
        %1508 = vmatpush1.msra.mxu0 0.0
        %1509 = vmatprep.subr.mxu0 0.0
        %1510 = vmatpush1.msra.mxu0 %v1475
        %1511 = vmatprep.subr.mxu0 0.0
        %1512 = vmatpush1.msra.mxu0 %v1473
        %1513 = vmatprep.subr.mxu0 0.0
        %1514 = vmatpush2.msra.mxu0 0.0
        %1515 = vmatprep.subr.mxu0 0.0
        %1516 = vmatpush2.msra.mxu0 0.0
        %1517 = vmatprep.subr.mxu0 0.0
        %1518 = vmatpush2.msra.mxu0 0.0
        %1519 = vmatprep.subr.mxu0 0.0
        %1520 = vmatpush2.msra.mxu0 0.0
        %1521 = vmatprep.subr.mxu0 0.0
        %1522 = vmatpush2.msra.mxu0 0.0
        %1523 = vmatprep.subr.mxu0 0.0
        %1524 = vmatpush2.msra.mxu0 0.0
        %1525 = vmatprep.subr.mxu0 0.0
        %1526 = vmatpush2.msra.mxu0 0.0
        %1527 = vmatprep.subr.mxu0 0.0
        %1528 = vmatpush2.msra.mxu0 0.0
        %1529 = vmatprep.subr.mxu0 0.0
        %1530 = vmatpush2.msra.mxu0 0.0
        %1531 = vmatprep.subr.mxu0 0.0
        %1532 = vmatpush2.msra.mxu0 0.0
        %1533 = vmatprep.subr.mxu0 0.0
        %1534 = vmatpush2.msra.mxu0 0.0
        %1535 = vmatprep.subr.mxu0 0.0
        %1536 = vmatpush2.msra.mxu0 0.0
        %1537 = vmatprep.subr.mxu0 0.0
        %1538 = vmatpush2.msra.mxu0 0.0
        %1539 = vmatprep.subr.mxu0 0.0
        %1540 = vmatpush2.msra.mxu0 0.0
        %1541 = vmatprep.subr.mxu0 0.0
        %1542 = vmatpush2.msra.mxu0 0.0
        %1543 = vmatprep.subr.mxu0 0.0
        %1544 = vmatpush2.msra.mxu0 0.0
        %1545 = vmatprep.mubr.f32.mxu0 0.0
        %1546 = vmatmul.mubr.f32.gmra.mxu0 %v1479
        %v1547 = vpop.f32.mrf.mxu0
        %v1548 = vadd.f32 0.0, %v1547
        %v1549 = vpop.f32.mrf.mxu0
        %1550 = vdwg.mxu0
        %v1551 = vpack.c.bf16 %v1548, %v1548
        %v1560 = vunpack.c.l.b16 %v1123
        %v1561 = vunpack.c.l.b16 %v1124
        %v1562 = vunpack.c.l.b16 %v1125
        %v1563 = vunpack.c.l.b16 %v1126
        %v1564 = vunpack.c.l.b16 %v1127
        %v1565 = vunpack.c.l.b16 %v1128
        %v1566 = vunpack.c.l.b16 %v1129
        %v1567 = vunpack.c.l.b16 %v1130
        %v1568 = vpack.c.b16 %v1561, %v1560
        %v1569 = vpack.c.b16 %v1563, %v1562
        %v1570 = vpack.c.b16 %v1565, %v1564
        %v1571 = vpack.c.b16 %v1567, %v1566
        %v1577 = vsel %vm1139, %v1551, 0
        %1579 = vmatprep.subr.bf16.mxu0 0
        %1580 = vmatpush1.bf16.msra.mxu0 0
        %1581 = vmatprep.subr.bf16.mxu0 0
        %1582 = vmatpush1.bf16.msra.mxu0 0
        %1583 = vmatprep.subr.bf16.mxu0 0
        %1584 = vmatpush1.bf16.msra.mxu0 0
        %1585 = vmatprep.subr.bf16.mxu0 0
        %1586 = vmatpush1.bf16.msra.mxu0 0
        %1587 = vmatprep.subr.bf16.mxu0 0
        %1588 = vmatpush1.bf16.msra.mxu0 %v1571
        %1589 = vmatprep.subr.bf16.mxu0 0
        %1590 = vmatpush1.bf16.msra.mxu0 %v1570
        %1591 = vmatprep.subr.bf16.mxu0 0
        %1592 = vmatpush1.bf16.msra.mxu0 %v1569
        %1593 = vmatprep.subr.bf16.mxu0 0
        %1594 = vmatpush1.bf16.msra.mxu0 %v1568
        %1595 = vmatprep.subr.bf16.mxu0 0
        %1596 = vmatpush2.bf16.msra.mxu0 0
        %1597 = vmatprep.subr.bf16.mxu0 0
        %1598 = vmatpush2.bf16.msra.mxu0 0
        %1599 = vmatprep.subr.bf16.mxu0 0
        %1600 = vmatpush2.bf16.msra.mxu0 0
        %1601 = vmatprep.subr.bf16.mxu0 0
        %1602 = vmatpush2.bf16.msra.mxu0 0
        %1603 = vmatprep.subr.bf16.mxu0 0
        %1604 = vmatpush2.bf16.msra.mxu0 0
        %1605 = vmatprep.subr.bf16.mxu0 0
        %1606 = vmatpush2.bf16.msra.mxu0 0
        %1607 = vmatprep.subr.bf16.mxu0 0
        %1608 = vmatpush2.bf16.msra.mxu0 0
        %1609 = vmatprep.subr.bf16.mxu0 0
        %1610 = vmatpush2.bf16.msra.mxu0 0
        %1611 = vmatprep.mubr.bf16.mxu0 0
        %1612 = vmatmul.mubr.bf16.gmra.mxu0 %v1577
        %v1613 = vpop.f32.mrf.mxu0
        %v1614 = vadd.f32 0.0, %v1613
        %v1615 = vpop.f32.mrf.mxu0
        %v1616 = vpop.f32.mrf.mxu0
        %v1617 = vpop.f32.mrf.mxu0
        %1618 = vdwg.mxu0
        %v1619 = vadd.f32 %v1374, %v1614
        %v1620 = vadd.f32 %v813, %v1619
        %1621 = vadd.xlane.f32.xlu0 %v1620
        %v1622 = vpop.xlane.xlu0 %1621
        %v1623 = vmul.f32 %v1622, %v816
        %v1624 = vsub.f32 %v1620, %v1623
        %v1625 = vmul.f32 %v1624, %v1624
        %1626 = vadd.xlane.f32.xlu0 %v1625
        %v1627 = vpop.xlane.xlu0 %1626
        %v1628 = vmul.f32 %v1627, %v816
        %v1629 = vadd.f32 %v1628, 1e-05
        %v1630 = vrsqrt.pop %v1629
        %v1631 = vmul.f32 %v1624, %v1630
        %v1632 = vpack.c.bf16 %v1631, %v1631
        %v1633 = vld [vmem:[%s699] sm:$0xff]
        %v1634 = vld [vmem:[%s699 + $0x8] sm:$0xff]
        %v1635 = vld [vmem:[%s699 + $0x10] sm:$0xff]
        %v1636 = vld [vmem:[%s699 + $0x18] sm:$0xff]
        %v1637 = vld [vmem:[%s699 + $0x20] sm:$0xff]
        %v1638 = vld [vmem:[%s699 + $0x28] sm:$0xff]
        %v1639 = vld [vmem:[%s699 + $0x30] sm:$0xff]
        %v1640 = vld [vmem:[%s699 + $0x38] sm:$0xff]
        %v1641 = vld [vmem:[%s699 + $0x40] sm:$0xff]
        %v1642 = vld [vmem:[%s699 + $0x48] sm:$0xff]
        %v1643 = vld [vmem:[%s699 + $0x50] sm:$0xff]
        %v1644 = vld [vmem:[%s699 + $0x58] sm:$0xff]
        %v1645 = vld [vmem:[%s699 + $0x60] sm:$0xff]
        %v1646 = vld [vmem:[%s699 + $0x68] sm:$0xff]
        %v1647 = vld [vmem:[%s699 + $0x70] sm:$0xff]
        %v1648 = vld [vmem:[%s699 + $0x78] sm:$0xff]
        %v1649 = vld [vmem:[%s699 + $0x80] sm:$0xff]
        %v1650 = vld [vmem:[%s699 + $0x88] sm:$0xff]
        %v1651 = vld [vmem:[%s699 + $0x90] sm:$0xff]
        %v1652 = vld [vmem:[%s699 + $0x98] sm:$0xff]
        %v1653 = vld [vmem:[%s699 + $0xa0] sm:$0xff]
        %v1654 = vld [vmem:[%s699 + $0xa8] sm:$0xff]
        %v1655 = vld [vmem:[%s699 + $0xb0] sm:$0xff]
        %v1656 = vld [vmem:[%s699 + $0xb8] sm:$0xff]
        %v1657 = vld [vmem:[%s699 + $0xc0] sm:$0xff]
        %v1658 = vld [vmem:[%s699 + $0xc8] sm:$0xff]
        %v1659 = vld [vmem:[%s699 + $0xd0] sm:$0xff]
        %v1660 = vld [vmem:[%s699 + $0xd8] sm:$0xff]
        %v1661 = vld [vmem:[%s699 + $0xe0] sm:$0xff]
        %v1662 = vld [vmem:[%s699 + $0xe8] sm:$0xff]
        %v1663 = vld [vmem:[%s699 + $0xf0] sm:$0xff]
        %v1664 = vld [vmem:[%s699 + $0xf8] sm:$0xff]
        %v1665 = vld [vmem:[%s802] sm:$0xf]
        %v1667 = vlaneseq
        %v1668 = vshrl.u32 %v1667, 7
        %v1669 = vsub.s32 0, %v1668
        %v1670 = vrot.slane %v1665, %v1669
        %v1671 = vlaneseq
        %v1672 = vshrl.u32 %v1671, 7
        %v1673 = vsub.s32 1, %v1672
        %v1674 = vrot.slane %v1665, %v1673
        %v1675 = vlaneseq
        %v1676 = vshrl.u32 %v1675, 7
        %v1677 = vsub.s32 2, %v1676
        %v1678 = vrot.slane %v1665, %v1677
        %v1679 = vlaneseq
        %v1680 = vshrl.u32 %v1679, 7
        %v1681 = vsub.s32 3, %v1680
        %v1682 = vrot.slane %v1665, %v1681
        %v1719 = vunpack.c.l.b16 %v1633
        %v1720 = vunpack.c.h.b16 %v1633
        %v1721 = vunpack.c.l.b16 %v1634
        %v1722 = vunpack.c.h.b16 %v1634
        %v1723 = vunpack.c.l.b16 %v1635
        %v1724 = vunpack.c.h.b16 %v1635
        %v1725 = vunpack.c.l.b16 %v1636
        %v1726 = vunpack.c.h.b16 %v1636
        %v1727 = vunpack.c.l.b16 %v1637
        %v1728 = vunpack.c.h.b16 %v1637
        %v1729 = vunpack.c.l.b16 %v1638
        %v1730 = vunpack.c.h.b16 %v1638
        %v1731 = vunpack.c.l.b16 %v1639
        %v1732 = vunpack.c.h.b16 %v1639
        %v1733 = vunpack.c.l.b16 %v1640
        %v1734 = vunpack.c.h.b16 %v1640
        %v1735 = vunpack.c.l.b16 %v1641
        %v1736 = vunpack.c.h.b16 %v1641
        %v1737 = vunpack.c.l.b16 %v1642
        %v1738 = vunpack.c.h.b16 %v1642
        %v1739 = vunpack.c.l.b16 %v1643
        %v1740 = vunpack.c.h.b16 %v1643
        %v1741 = vunpack.c.l.b16 %v1644
        %v1742 = vunpack.c.h.b16 %v1644
        %v1743 = vunpack.c.l.b16 %v1645
        %v1744 = vunpack.c.h.b16 %v1645
        %v1745 = vunpack.c.l.b16 %v1646
        %v1746 = vunpack.c.h.b16 %v1646
        %v1747 = vunpack.c.l.b16 %v1647
        %v1748 = vunpack.c.h.b16 %v1647
        %v1749 = vunpack.c.l.b16 %v1648
        %v1750 = vunpack.c.h.b16 %v1648
        %v1751 = vunpack.c.l.b16 %v1649
        %v1752 = vunpack.c.h.b16 %v1649
        %v1753 = vunpack.c.l.b16 %v1650
        %v1754 = vunpack.c.h.b16 %v1650
        %v1755 = vunpack.c.l.b16 %v1651
        %v1756 = vunpack.c.h.b16 %v1651
        %v1757 = vunpack.c.l.b16 %v1652
        %v1758 = vunpack.c.h.b16 %v1652
        %v1759 = vunpack.c.l.b16 %v1653
        %v1760 = vunpack.c.h.b16 %v1653
        %v1761 = vunpack.c.l.b16 %v1654
        %v1762 = vunpack.c.h.b16 %v1654
        %v1763 = vunpack.c.l.b16 %v1655
        %v1764 = vunpack.c.h.b16 %v1655
        %v1765 = vunpack.c.l.b16 %v1656
        %v1766 = vunpack.c.h.b16 %v1656
        %v1767 = vunpack.c.l.b16 %v1657
        %v1768 = vunpack.c.h.b16 %v1657
        %v1769 = vunpack.c.l.b16 %v1658
        %v1770 = vunpack.c.h.b16 %v1658
        %v1771 = vunpack.c.l.b16 %v1659
        %v1772 = vunpack.c.h.b16 %v1659
        %v1773 = vunpack.c.l.b16 %v1660
        %v1774 = vunpack.c.h.b16 %v1660
        %v1775 = vunpack.c.l.b16 %v1661
        %v1776 = vunpack.c.h.b16 %v1661
        %v1777 = vunpack.c.l.b16 %v1662
        %v1778 = vunpack.c.h.b16 %v1662
        %v1779 = vunpack.c.l.b16 %v1663
        %v1780 = vunpack.c.h.b16 %v1663
        %v1781 = vunpack.c.l.b16 %v1664
        %v1782 = vunpack.c.h.b16 %v1664
        %v1783 = vpack.c.b16 %v1723, %v1719
        %v1784 = vpack.c.b16 %v1724, %v1720
        %v1785 = vpack.c.b16 %v1725, %v1721
        %v1786 = vpack.c.b16 %v1726, %v1722
        %v1787 = vpack.c.b16 %v1731, %v1727
        %v1788 = vpack.c.b16 %v1732, %v1728
        %v1789 = vpack.c.b16 %v1733, %v1729
        %v1790 = vpack.c.b16 %v1734, %v1730
        %v1791 = vpack.c.b16 %v1739, %v1735
        %v1792 = vpack.c.b16 %v1740, %v1736
        %v1793 = vpack.c.b16 %v1741, %v1737
        %v1794 = vpack.c.b16 %v1742, %v1738
        %v1795 = vpack.c.b16 %v1747, %v1743
        %v1796 = vpack.c.b16 %v1748, %v1744
        %v1797 = vpack.c.b16 %v1749, %v1745
        %v1798 = vpack.c.b16 %v1750, %v1746
        %v1799 = vpack.c.b16 %v1755, %v1751
        %v1800 = vpack.c.b16 %v1756, %v1752
        %v1801 = vpack.c.b16 %v1757, %v1753
        %v1802 = vpack.c.b16 %v1758, %v1754
        %v1803 = vpack.c.b16 %v1763, %v1759
        %v1804 = vpack.c.b16 %v1764, %v1760
        %v1805 = vpack.c.b16 %v1765, %v1761
        %v1806 = vpack.c.b16 %v1766, %v1762
        %v1807 = vpack.c.b16 %v1771, %v1767
        %v1808 = vpack.c.b16 %v1772, %v1768
        %v1809 = vpack.c.b16 %v1773, %v1769
        %v1810 = vpack.c.b16 %v1774, %v1770
        %v1811 = vpack.c.b16 %v1779, %v1775
        %v1812 = vpack.c.b16 %v1780, %v1776
        %v1813 = vpack.c.b16 %v1781, %v1777
        %v1814 = vpack.c.b16 %v1782, %v1778
        %1847 = vmatprep.subr.bf16.mxu0 %v1812
        %1848 = vmatpush1.bf16.msra.mxu0 %v1811
        %1849 = vmatprep.subr.bf16.mxu0 %v1808
        %1850 = vmatpush1.bf16.msra.mxu0 %v1807
        %1851 = vmatprep.subr.bf16.mxu0 %v1804
        %1852 = vmatpush1.bf16.msra.mxu0 %v1803
        %1853 = vmatprep.subr.bf16.mxu0 %v1800
        %1854 = vmatpush1.bf16.msra.mxu0 %v1799
        %1855 = vmatprep.subr.bf16.mxu0 %v1796
        %1856 = vmatpush1.bf16.msra.mxu0 %v1795
        %1857 = vmatprep.subr.bf16.mxu0 %v1792
        %1858 = vmatpush1.bf16.msra.mxu0 %v1791
        %1859 = vmatprep.subr.bf16.mxu0 %v1788
        %1860 = vmatpush1.bf16.msra.mxu0 %v1787
        %1861 = vmatprep.subr.bf16.mxu0 %v1784
        %1862 = vmatpush1.bf16.msra.mxu0 %v1783
        %1863 = vmatprep.subr.bf16.mxu0 0
        %1864 = vmatpush2.bf16.msra.mxu0 0
        %1865 = vmatprep.subr.bf16.mxu0 0
        %1866 = vmatpush2.bf16.msra.mxu0 0
        %1867 = vmatprep.subr.bf16.mxu0 0
        %1868 = vmatpush2.bf16.msra.mxu0 0
        %1869 = vmatprep.subr.bf16.mxu0 0
        %1870 = vmatpush2.bf16.msra.mxu0 0
        %1871 = vmatprep.subr.bf16.mxu0 0
        %1872 = vmatpush2.bf16.msra.mxu0 0
        %1873 = vmatprep.subr.bf16.mxu0 0
        %1874 = vmatpush2.bf16.msra.mxu0 0
        %1875 = vmatprep.subr.bf16.mxu0 0
        %1876 = vmatpush2.bf16.msra.mxu0 0
        %1877 = vmatprep.subr.bf16.mxu0 0
        %1878 = vmatpush2.bf16.msra.mxu0 0
        %1879 = vmatprep.mubr.bf16.mxu0 0
        %1880 = vmatmul.mubr.bf16.gmra.mxu0 %v1632
        %v1881 = vpop.f32.mrf.mxu0
        %v1882 = vadd.f32 %v1670, %v1881
        %v1883 = vpop.f32.mrf.mxu0
        %v1884 = vadd.f32 %v1674, %v1883
        %v1885 = vpop.f32.mrf.mxu0
        %v1886 = vpop.f32.mrf.mxu0
        %1887 = vdwg.mxu0
        %1888 = vmatprep.subr.bf16.mxu0 %v1814
        %1889 = vmatpush1.bf16.msra.mxu0 %v1813
        %1890 = vmatprep.subr.bf16.mxu0 %v1810
        %1891 = vmatpush1.bf16.msra.mxu0 %v1809
        %1892 = vmatprep.subr.bf16.mxu0 %v1806
        %1893 = vmatpush1.bf16.msra.mxu0 %v1805
        %1894 = vmatprep.subr.bf16.mxu0 %v1802
        %1895 = vmatpush1.bf16.msra.mxu0 %v1801
        %1896 = vmatprep.subr.bf16.mxu0 %v1798
        %1897 = vmatpush1.bf16.msra.mxu0 %v1797
        %1898 = vmatprep.subr.bf16.mxu0 %v1794
        %1899 = vmatpush1.bf16.msra.mxu0 %v1793
        %1900 = vmatprep.subr.bf16.mxu0 %v1790
        %1901 = vmatpush1.bf16.msra.mxu0 %v1789
        %1902 = vmatprep.subr.bf16.mxu0 %v1786
        %1903 = vmatpush1.bf16.msra.mxu0 %v1785
        %1904 = vmatprep.subr.bf16.mxu0 0
        %1905 = vmatpush2.bf16.msra.mxu0 0
        %1906 = vmatprep.subr.bf16.mxu0 0
        %1907 = vmatpush2.bf16.msra.mxu0 0
        %1908 = vmatprep.subr.bf16.mxu0 0
        %1909 = vmatpush2.bf16.msra.mxu0 0
        %1910 = vmatprep.subr.bf16.mxu0 0
        %1911 = vmatpush2.bf16.msra.mxu0 0
        %1912 = vmatprep.subr.bf16.mxu0 0
        %1913 = vmatpush2.bf16.msra.mxu0 0
        %1914 = vmatprep.subr.bf16.mxu0 0
        %1915 = vmatpush2.bf16.msra.mxu0 0
        %1916 = vmatprep.subr.bf16.mxu0 0
        %1917 = vmatpush2.bf16.msra.mxu0 0
        %1918 = vmatprep.subr.bf16.mxu0 0
        %1919 = vmatpush2.bf16.msra.mxu0 0
        %1920 = vmatprep.mubr.bf16.mxu0 0
        %1921 = vmatmul.mubr.bf16.gmra.mxu0 %v1632
        %v1922 = vpop.f32.mrf.mxu0
        %v1923 = vadd.f32 %v1678, %v1922
        %v1924 = vpop.f32.mrf.mxu0
        %v1925 = vadd.f32 %v1682, %v1924
        %v1926 = vpop.f32.mrf.mxu0
        %v1927 = vpop.f32.mrf.mxu0
        %1928 = vdwg.mxu0
        %v1929 = vmul.f32 %v1882, 0.5
        %v1930 = vmul.f32 %v1884, 0.5
        %v1931 = vmul.f32 %v1923, 0.5
        %v1932 = vmul.f32 %v1925, 0.5
        %v1933 = vmul.f32 %v1882, 0.044715
        %v1934 = vmul.f32 %v1884, 0.044715
        %v1935 = vmul.f32 %v1923, 0.044715
        %v1936 = vmul.f32 %v1925, 0.044715
        %v1937 = vmul.f32 %v1933, %v1882
        %v1938 = vmul.f32 %v1934, %v1884
        %v1939 = vmul.f32 %v1935, %v1923
        %v1940 = vmul.f32 %v1936, %v1925
        %v1941 = vmul.f32 %v1937, %v1882
        %v1942 = vmul.f32 %v1938, %v1884
        %v1943 = vmul.f32 %v1939, %v1923
        %v1944 = vmul.f32 %v1940, %v1925
        %v1945 = vadd.f32 %v1882, %v1941
        %v1946 = vadd.f32 %v1884, %v1942
        %v1947 = vadd.f32 %v1923, %v1943
        %v1948 = vadd.f32 %v1925, %v1944
        %v1949 = vmul.f32 %v1945, 0.7978846
        %v1950 = vmul.f32 %v1946, 0.7978846
        %v1951 = vmul.f32 %v1947, 0.7978846
        %v1952 = vmul.f32 %v1948, 0.7978846
        %v1953 = vtanh.pop %v1949
        %v1954 = vtanh.pop %v1950
        %v1955 = vtanh.pop %v1951
        %v1956 = vtanh.pop %v1952
        %v1957 = vadd.f32 %v1953, 1.0
        %v1958 = vadd.f32 %v1954, 1.0
        %v1959 = vadd.f32 %v1955, 1.0
        %v1960 = vadd.f32 %v1956, 1.0
        %v1961 = vmul.f32 %v1929, %v1957
        %v1962 = vmul.f32 %v1930, %v1958
        %v1963 = vmul.f32 %v1931, %v1959
        %v1964 = vmul.f32 %v1932, %v1960
        %v1965 = vpack.c.bf16 %v1961, %v1961
        %v1966 = vpack.c.bf16 %v1962, %v1962
        %v1967 = vpack.c.bf16 %v1963, %v1963
        %v1968 = vpack.c.bf16 %v1964, %v1964
        %v1969 = vld [vmem:[%s708] sm:$0xf]
        %v1970 = vld [vmem:[%s708 + $0x4] sm:$0xf]
        %v1971 = vld [vmem:[%s708 + $0x8] sm:$0xf]
        %v1972 = vld [vmem:[%s708 + $0xc] sm:$0xf]
        %v1973 = vld [vmem:[%s708 + $0x10] sm:$0xf]
        %v1974 = vld [vmem:[%s708 + $0x14] sm:$0xf]
        %v1975 = vld [vmem:[%s708 + $0x18] sm:$0xf]
        %v1976 = vld [vmem:[%s708 + $0x1c] sm:$0xf]
        %v1977 = vld [vmem:[%s708 + $0x20] sm:$0xf]
        %v1978 = vld [vmem:[%s708 + $0x24] sm:$0xf]
        %v1979 = vld [vmem:[%s708 + $0x28] sm:$0xf]
        %v1980 = vld [vmem:[%s708 + $0x2c] sm:$0xf]
        %v1981 = vld [vmem:[%s708 + $0x30] sm:$0xf]
        %v1982 = vld [vmem:[%s708 + $0x34] sm:$0xf]
        %v1983 = vld [vmem:[%s708 + $0x38] sm:$0xf]
        %v1984 = vld [vmem:[%s708 + $0x3c] sm:$0xf]
        %v1985 = vld [vmem:[%s708 + $0x40] sm:$0xf]
        %v1986 = vld [vmem:[%s708 + $0x44] sm:$0xf]
        %v1987 = vld [vmem:[%s708 + $0x48] sm:$0xf]
        %v1988 = vld [vmem:[%s708 + $0x4c] sm:$0xf]
        %v1989 = vld [vmem:[%s708 + $0x50] sm:$0xf]
        %v1990 = vld [vmem:[%s708 + $0x54] sm:$0xf]
        %v1991 = vld [vmem:[%s708 + $0x58] sm:$0xf]
        %v1992 = vld [vmem:[%s708 + $0x5c] sm:$0xf]
        %v1993 = vld [vmem:[%s708 + $0x60] sm:$0xf]
        %v1994 = vld [vmem:[%s708 + $0x64] sm:$0xf]
        %v1995 = vld [vmem:[%s708 + $0x68] sm:$0xf]
        %v1996 = vld [vmem:[%s708 + $0x6c] sm:$0xf]
        %v1997 = vld [vmem:[%s708 + $0x70] sm:$0xf]
        %v1998 = vld [vmem:[%s708 + $0x74] sm:$0xf]
        %v1999 = vld [vmem:[%s708 + $0x78] sm:$0xf]
        %v2000 = vld [vmem:[%s708 + $0x7c] sm:$0xf]
        %v2001 = vld [vmem:[%s708 + $0x80] sm:$0xf]
        %v2002 = vld [vmem:[%s708 + $0x84] sm:$0xf]
        %v2003 = vld [vmem:[%s708 + $0x88] sm:$0xf]
        %v2004 = vld [vmem:[%s708 + $0x8c] sm:$0xf]
        %v2005 = vld [vmem:[%s708 + $0x90] sm:$0xf]
        %v2006 = vld [vmem:[%s708 + $0x94] sm:$0xf]
        %v2007 = vld [vmem:[%s708 + $0x98] sm:$0xf]
        %v2008 = vld [vmem:[%s708 + $0x9c] sm:$0xf]
        %v2009 = vld [vmem:[%s708 + $0xa0] sm:$0xf]
        %v2010 = vld [vmem:[%s708 + $0xa4] sm:$0xf]
        %v2011 = vld [vmem:[%s708 + $0xa8] sm:$0xf]
        %v2012 = vld [vmem:[%s708 + $0xac] sm:$0xf]
        %v2013 = vld [vmem:[%s708 + $0xb0] sm:$0xf]
        %v2014 = vld [vmem:[%s708 + $0xb4] sm:$0xf]
        %v2015 = vld [vmem:[%s708 + $0xb8] sm:$0xf]
        %v2016 = vld [vmem:[%s708 + $0xbc] sm:$0xf]
        %v2017 = vld [vmem:[%s708 + $0xc0] sm:$0xf]
        %v2018 = vld [vmem:[%s708 + $0xc4] sm:$0xf]
        %v2019 = vld [vmem:[%s708 + $0xc8] sm:$0xf]
        %v2020 = vld [vmem:[%s708 + $0xcc] sm:$0xf]
        %v2021 = vld [vmem:[%s708 + $0xd0] sm:$0xf]
        %v2022 = vld [vmem:[%s708 + $0xd4] sm:$0xf]
        %v2023 = vld [vmem:[%s708 + $0xd8] sm:$0xf]
        %v2024 = vld [vmem:[%s708 + $0xdc] sm:$0xf]
        %v2025 = vld [vmem:[%s708 + $0xe0] sm:$0xf]
        %v2026 = vld [vmem:[%s708 + $0xe4] sm:$0xf]
        %v2027 = vld [vmem:[%s708 + $0xe8] sm:$0xf]
        %v2028 = vld [vmem:[%s708 + $0xec] sm:$0xf]
        %v2029 = vld [vmem:[%s708 + $0xf0] sm:$0xf]
        %v2030 = vld [vmem:[%s708 + $0xf4] sm:$0xf]
        %v2031 = vld [vmem:[%s708 + $0xf8] sm:$0xf]
        %v2032 = vld [vmem:[%s708 + $0xfc] sm:$0xf]
        %v2033 = vld [vmem:[%s805] sm:$0x1]
        %v2035 = vlaneseq
        %v2036 = vshrl.u32 %v2035, 7
        %v2037 = vsub.s32 0, %v2036
        %v2038 = vrot.slane %v2033, %v2037
        %v2104 = vunpack.c.l.b16 %v1969
        %v2105 = vunpack.c.l.b16 %v1970
        %v2106 = vunpack.c.l.b16 %v1971
        %v2107 = vunpack.c.l.b16 %v1972
        %v2108 = vunpack.c.l.b16 %v1973
        %v2109 = vunpack.c.l.b16 %v1974
        %v2110 = vunpack.c.l.b16 %v1975
        %v2111 = vunpack.c.l.b16 %v1976
        %v2112 = vunpack.c.l.b16 %v1977
        %v2113 = vunpack.c.l.b16 %v1978
        %v2114 = vunpack.c.l.b16 %v1979
        %v2115 = vunpack.c.l.b16 %v1980
        %v2116 = vunpack.c.l.b16 %v1981
        %v2117 = vunpack.c.l.b16 %v1982
        %v2118 = vunpack.c.l.b16 %v1983
        %v2119 = vunpack.c.l.b16 %v1984
        %v2120 = vunpack.c.l.b16 %v1985
        %v2121 = vunpack.c.l.b16 %v1986
        %v2122 = vunpack.c.l.b16 %v1987
        %v2123 = vunpack.c.l.b16 %v1988
        %v2124 = vunpack.c.l.b16 %v1989
        %v2125 = vunpack.c.l.b16 %v1990
        %v2126 = vunpack.c.l.b16 %v1991
        %v2127 = vunpack.c.l.b16 %v1992
        %v2128 = vunpack.c.l.b16 %v1993
        %v2129 = vunpack.c.l.b16 %v1994
        %v2130 = vunpack.c.l.b16 %v1995
        %v2131 = vunpack.c.l.b16 %v1996
        %v2132 = vunpack.c.l.b16 %v1997
        %v2133 = vunpack.c.l.b16 %v1998
        %v2134 = vunpack.c.l.b16 %v1999
        %v2135 = vunpack.c.l.b16 %v2000
        %v2136 = vunpack.c.l.b16 %v2001
        %v2137 = vunpack.c.l.b16 %v2002
        %v2138 = vunpack.c.l.b16 %v2003
        %v2139 = vunpack.c.l.b16 %v2004
        %v2140 = vunpack.c.l.b16 %v2005
        %v2141 = vunpack.c.l.b16 %v2006
        %v2142 = vunpack.c.l.b16 %v2007
        %v2143 = vunpack.c.l.b16 %v2008
        %v2144 = vunpack.c.l.b16 %v2009
        %v2145 = vunpack.c.l.b16 %v2010
        %v2146 = vunpack.c.l.b16 %v2011
        %v2147 = vunpack.c.l.b16 %v2012
        %v2148 = vunpack.c.l.b16 %v2013
        %v2149 = vunpack.c.l.b16 %v2014
        %v2150 = vunpack.c.l.b16 %v2015
        %v2151 = vunpack.c.l.b16 %v2016
        %v2152 = vunpack.c.l.b16 %v2017
        %v2153 = vunpack.c.l.b16 %v2018
        %v2154 = vunpack.c.l.b16 %v2019
        %v2155 = vunpack.c.l.b16 %v2020
        %v2156 = vunpack.c.l.b16 %v2021
        %v2157 = vunpack.c.l.b16 %v2022
        %v2158 = vunpack.c.l.b16 %v2023
        %v2159 = vunpack.c.l.b16 %v2024
        %v2160 = vunpack.c.l.b16 %v2025
        %v2161 = vunpack.c.l.b16 %v2026
        %v2162 = vunpack.c.l.b16 %v2027
        %v2163 = vunpack.c.l.b16 %v2028
        %v2164 = vunpack.c.l.b16 %v2029
        %v2165 = vunpack.c.l.b16 %v2030
        %v2166 = vunpack.c.l.b16 %v2031
        %v2167 = vunpack.c.l.b16 %v2032
        %v2168 = vpack.c.b16 %v2105, %v2104
        %v2169 = vpack.c.b16 %v2107, %v2106
        %v2170 = vpack.c.b16 %v2109, %v2108
        %v2171 = vpack.c.b16 %v2111, %v2110
        %v2172 = vpack.c.b16 %v2113, %v2112
        %v2173 = vpack.c.b16 %v2115, %v2114
        %v2174 = vpack.c.b16 %v2117, %v2116
        %v2175 = vpack.c.b16 %v2119, %v2118
        %v2176 = vpack.c.b16 %v2121, %v2120
        %v2177 = vpack.c.b16 %v2123, %v2122
        %v2178 = vpack.c.b16 %v2125, %v2124
        %v2179 = vpack.c.b16 %v2127, %v2126
        %v2180 = vpack.c.b16 %v2129, %v2128
        %v2181 = vpack.c.b16 %v2131, %v2130
        %v2182 = vpack.c.b16 %v2133, %v2132
        %v2183 = vpack.c.b16 %v2135, %v2134
        %v2184 = vpack.c.b16 %v2137, %v2136
        %v2185 = vpack.c.b16 %v2139, %v2138
        %v2186 = vpack.c.b16 %v2141, %v2140
        %v2187 = vpack.c.b16 %v2143, %v2142
        %v2188 = vpack.c.b16 %v2145, %v2144
        %v2189 = vpack.c.b16 %v2147, %v2146
        %v2190 = vpack.c.b16 %v2149, %v2148
        %v2191 = vpack.c.b16 %v2151, %v2150
        %v2192 = vpack.c.b16 %v2153, %v2152
        %v2193 = vpack.c.b16 %v2155, %v2154
        %v2194 = vpack.c.b16 %v2157, %v2156
        %v2195 = vpack.c.b16 %v2159, %v2158
        %v2196 = vpack.c.b16 %v2161, %v2160
        %v2197 = vpack.c.b16 %v2163, %v2162
        %v2198 = vpack.c.b16 %v2165, %v2164
        %v2199 = vpack.c.b16 %v2167, %v2166
        %2232 = vmatprep.subr.bf16.mxu0 0
        %2233 = vmatpush1.bf16.msra.mxu0 %v2175
        %2234 = vmatprep.subr.bf16.mxu0 0
        %2235 = vmatpush1.bf16.msra.mxu0 %v2174
        %2236 = vmatprep.subr.bf16.mxu0 0
        %2237 = vmatpush1.bf16.msra.mxu0 %v2173
        %2238 = vmatprep.subr.bf16.mxu0 0
        %2239 = vmatpush1.bf16.msra.mxu0 %v2172
        %2240 = vmatprep.subr.bf16.mxu0 0
        %2241 = vmatpush1.bf16.msra.mxu0 %v2171
        %2242 = vmatprep.subr.bf16.mxu0 0
        %2243 = vmatpush1.bf16.msra.mxu0 %v2170
        %2244 = vmatprep.subr.bf16.mxu0 0
        %2245 = vmatpush1.bf16.msra.mxu0 %v2169
        %2246 = vmatprep.subr.bf16.mxu0 0
        %2247 = vmatpush1.bf16.msra.mxu0 %v2168
        %2248 = vmatprep.subr.bf16.mxu0 0
        %2249 = vmatpush2.bf16.msra.mxu0 %v2183
        %2250 = vmatprep.subr.bf16.mxu0 0
        %2251 = vmatpush2.bf16.msra.mxu0 %v2182
        %2252 = vmatprep.subr.bf16.mxu0 0
        %2253 = vmatpush2.bf16.msra.mxu0 %v2181
        %2254 = vmatprep.subr.bf16.mxu0 0
        %2255 = vmatpush2.bf16.msra.mxu0 %v2180
        %2256 = vmatprep.subr.bf16.mxu0 0
        %2257 = vmatpush2.bf16.msra.mxu0 %v2179
        %2258 = vmatprep.subr.bf16.mxu0 0
        %2259 = vmatpush2.bf16.msra.mxu0 %v2178
        %2260 = vmatprep.subr.bf16.mxu0 0
        %2261 = vmatpush2.bf16.msra.mxu0 %v2177
        %2262 = vmatprep.subr.bf16.mxu0 0
        %2263 = vmatpush2.bf16.msra.mxu0 %v2176
        %2264 = vmatprep.mubr.bf16.mxu0 %v1966
        %2265 = vmatmul.mubr.bf16.gmra.mxu0 %v1965
        %v2266 = vpop.f32.mrf.mxu0
        %v2267 = vadd.f32 %v2038, %v2266
        %v2268 = vpop.f32.mrf.mxu0
        %v2269 = vpop.f32.mrf.mxu0
        %v2270 = vpop.f32.mrf.mxu0
        %2271 = vdwg.mxu0
        %2272 = vmatprep.subr.bf16.mxu0 0
        %2273 = vmatpush1.bf16.msra.mxu0 %v2191
        %2274 = vmatprep.subr.bf16.mxu0 0
        %2275 = vmatpush1.bf16.msra.mxu0 %v2190
        %2276 = vmatprep.subr.bf16.mxu0 0
        %2277 = vmatpush1.bf16.msra.mxu0 %v2189
        %2278 = vmatprep.subr.bf16.mxu0 0
        %2279 = vmatpush1.bf16.msra.mxu0 %v2188
        %2280 = vmatprep.subr.bf16.mxu0 0
        %2281 = vmatpush1.bf16.msra.mxu0 %v2187
        %2282 = vmatprep.subr.bf16.mxu0 0
        %2283 = vmatpush1.bf16.msra.mxu0 %v2186
        %2284 = vmatprep.subr.bf16.mxu0 0
        %2285 = vmatpush1.bf16.msra.mxu0 %v2185
        %2286 = vmatprep.subr.bf16.mxu0 0
        %2287 = vmatpush1.bf16.msra.mxu0 %v2184
        %2288 = vmatprep.subr.bf16.mxu0 0
        %2289 = vmatpush2.bf16.msra.mxu0 %v2199
        %2290 = vmatprep.subr.bf16.mxu0 0
        %2291 = vmatpush2.bf16.msra.mxu0 %v2198
        %2292 = vmatprep.subr.bf16.mxu0 0
        %2293 = vmatpush2.bf16.msra.mxu0 %v2197
        %2294 = vmatprep.subr.bf16.mxu0 0
        %2295 = vmatpush2.bf16.msra.mxu0 %v2196
        %2296 = vmatprep.subr.bf16.mxu0 0
        %2297 = vmatpush2.bf16.msra.mxu0 %v2195
        %2298 = vmatprep.subr.bf16.mxu0 0
        %2299 = vmatpush2.bf16.msra.mxu0 %v2194
        %2300 = vmatprep.subr.bf16.mxu0 0
        %2301 = vmatpush2.bf16.msra.mxu0 %v2193
        %2302 = vmatprep.subr.bf16.mxu0 0
        %2303 = vmatpush2.bf16.msra.mxu0 %v2192
        %2304 = vmatprep.mubr.bf16.mxu0 %v1968
        %2305 = vmatmul.mubr.bf16.gmra.mxu0 %v1967
        %v2306 = vpop.f32.mrf.mxu0
        %v2307 = vadd.f32 %v2267, %v2306
        %v2308 = vpop.f32.mrf.mxu0
        %v2309 = vpop.f32.mrf.mxu0
        %v2310 = vpop.f32.mrf.mxu0
        %2311 = vdwg.mxu0
        %v2312 = vadd.f32 %v1620, %v2307
        %2313 = vst [vmem:[#allocation2] sm:$0xff] %v2312
        %p2314 = scmp.eq.s32.totalorder %s49, 3
        // Predicated region
        $region113: #{tpu_custom_call.1} parent=67 // pred_check
          %p2315 = pneg %p2314
        $region114: #{tpu_custom_call.1} parent=67 // pred_check_branch
          %2317 = sbr.rel (%p2315) target = $region116
        $region115: #{tpu_custom_call.1} parent=67 // pred_region
          %2318 = vadd.xlane.f32.xlu0 %v2312
          %v2319 = vpop.xlane.xlu0 %2318
          %v2320 = vmul.f32 %v2319, %v816
          %v2321 = vsub.f32 %v2312, %v2320
          %v2322 = vmul.f32 %v2321, %v2321
          %2323 = vadd.xlane.f32.xlu0 %v2322
          %v2324 = vpop.xlane.xlu0 %2323
          %v2325 = vmul.f32 %v2324, %v816
          %v2326 = vadd.f32 %v2325, 1e-05
          %v2327 = vrsqrt.pop %v2326
          %v2328 = vmul.f32 %v2321, %v2327
          %2329 = vst [vmem:[%s798] sm:$0xff] %v2328
        $region116: #{tpu_custom_call.1} parent=67 // pred_fallthru
          _
        %s2330 = sand.u32 %s376, 1
        %s2331 = scalar_lea.sflag [#allocation5], %s2330
        %s2332 = sand.u32 %s376, 1
        %s2333 = smul.addr %s2332, 8
        %s2334 = scalar_lea.vmem [#allocation20], %s2333
        // Predicated region
        $region117: #{tpu_custom_call.1} parent=67 // pred_check
          %p2335 = pneg %p386
        $region118: #{tpu_custom_call.1} parent=67 // pred_check_branch
          %2337 = sbr.rel (%p2335) target = $region120
        $region119: #{tpu_custom_call.1} parent=67 // pred_region
          %s2339 = ssub.s32 128, 128
          %2340 = vsyncadd %s2331, %s2339
          %s2341 = smul.addr %s48, 128
          %s2342 = scalar_lea.hbm %s12, %s2341
          %s2344 = sshll.u32 %s2334, 4
          %s2345 = int_to_ptr.vmem [resolvable:$true] %s2344
          %2347 = dma.vmem_to_hbm [thread:$0]  %s2345, 128, %s2342, %s2331
        $region120: #{tpu_custom_call.1} parent=67 // pred_fallthru
          _
      $region68: #{tpu_custom_call.1} parent=5 // pred_fallthru
        _
      %p2348 = scmp.le.s32.totalorder 2, %s39
      // Predicated region
      $region121: #{tpu_custom_call.1} parent=5 // pred_check
        %p2349 = pneg %p2348
      $region122: #{tpu_custom_call.1} parent=5 // pred_check_branch
        %2351 = sbr.rel (%p2349) target = $region124
      $region123: #{tpu_custom_call.1} parent=5 // pred_region
        %s2352 = ssub.s32 %s39, 2
        // Predicated region
        $region125: #{tpu_custom_call.1} parent=123 // pred_check
          %p2353 = pneg %p392
        $region126: #{tpu_custom_call.1} parent=123 // pred_check_branch
          %2355 = sbr.rel (%p2353) target = $region128
        $region127: #{tpu_custom_call.1} parent=123 // pred_region
          %s2356 = sand.u32 %s377, 1
          %s2357 = scalar_lea.sflag [#allocation5], %s2356
          %s2358 = sand.u32 %s377, 1
          %s2359 = smul.addr %s2358, 8
          %s2360 = scalar_lea.vmem [#allocation20], %s2359
          %2361 = dma.done %s2357, 128
        $region128: #{tpu_custom_call.1} parent=123 // pred_fallthru
          _
      $region124: #{tpu_custom_call.1} parent=5 // pred_fallthru
        _
    $region6: #{tpu_custom_call.1} parent=1 // loop_footer
      %s43 = sadd.s32 1, %s39
    $region7: #{tpu_custom_call.1} parent=1 // loop_footer_branch
      %38 = sbr.rel target = $region3
    $region8: #{tpu_custom_call.1} parent=1 // loop_exit
      _
    %2362 = vsyncpa [#allocation4], 1
    %s2363 = scalar_lea.sflag [#allocation4], 1
    %2364 = vsyncpa %s2363, 1
    %2365 = vsyncpa [#allocation7], 1
    %s2366 = scalar_lea.sflag [#allocation7], 1
    %2367 = vsyncpa %s2366, 1
    %2368 = vsyncpa [#allocation10], 1
    %s2369 = scalar_lea.sflag [#allocation10], 1
    %2370 = vsyncpa %s2369, 1
    %2371 = vsyncpa [#allocation13], 1
    %s2372 = scalar_lea.sflag [#allocation13], 1
    %2373 = vsyncpa %s2372, 1
    %2374 = vsyncpa [#allocation16], 1
    %s2375 = scalar_lea.sflag [#allocation16], 1
    %2376 = vsyncpa %s2375, 1
    %2377 = vsyncpa [#allocation19], 1
    %s2378 = scalar_lea.sflag [#allocation19], 1
    %2379 = vsyncpa %s2378, 1
    %2380 = vsyncpa [#allocation5], 1
    %s2381 = scalar_lea.sflag [#allocation5], 1
    %2382 = vsyncpa %s2381, 1

</llo_original>
